<compile_context>
chip_gen: v6e
topology: v6e:2x2x1
jax: 0.10.0
libtpu: 0.0.40
codegen_flags: <defaults>
</compile_context>

<pallas_src>
import math

import jax
import jax.numpy as jnp
import numpy as np
from jax import lax
from jax.experimental import pallas as pl
from jax.experimental.pallas import tpu as pltpu


def _round_up(v, m):
    return -(-v // m) * m


# -------------------- wrapper + fused Pallas kernel --------------------

def cnn3d_forward(x, conv_w, conv_b, head_w, head_b):
    """Fused stem-Conv3d + ReLU + global-avg-pool + Linear head, then .T.

    Matches the PyTorch forward: backbone(x.float()) followed by
    transpose(0, 1)  ->  (n_out_features, B).
    """
    x = x.astype(jnp.float32)                       # x.type(torch.cuda.FloatTensor)
    B, C, T, H, W = x.shape
    Cout, Cin, kT, kH, kW = conv_w.shape
    assert C == Cin
    To, Ho, Wo = T - kT + 1, H - kH + 1, W - kW + 1   # VALID conv, stride 1
    n_out = head_w.shape[1]

    # ---- lane/sublane-dense padded sizes ----------------------------------
    g = 128 // math.gcd(Cout, 128)
    Wop = _round_up(Wo, g)              # pad wo so Cout*Wop % 128 == 0
    CW = Cin * W                        # one input scanline
    CWo = Cout * Wop                    # lane-dense conv-output width (512)
    NOUTP = _round_up(n_out, 128)       # lane-dense head-output width (512)
    Npos = To * Ho * Wo                 # global-avg-pool divisor
    PH = To * Ho                        # conv-output rows per batch (84)
    PHp = _round_up(PH, 8)              # sublane-aligned rows per batch (88)
    Kraw = kT * kH * CW                 # tap-stacked contraction (576)
    Kp = _round_up(Kraw + 1, 128)       # + bias column, padded to 640
    M = B * PHp                         # merged matmul M (176)

    # ---- one-time layout prep (tiny, in XLA glue) --------------------------
    # x laid out as (B, T, H, Cin*W): each row is one input scanline.
    x_t = jnp.transpose(x, (0, 2, 3, 1, 4)).reshape(B, T, H, CW)
    # Tap-stacked im2col over (T, H) only — kW is folded into the banded
    # weight, so the blow-up is 9x of a scanline, not 27x of the tensor.
    cols = [x_t[:, kt:kt + To, kh:kh + Ho, :]
            for kt in range(kT) for kh in range(kH)]     # each (B, To, Ho, CW)
    lhs = jnp.concatenate(cols, axis=-1).reshape(B, PH, Kraw)
    # ones column -> bias row of the weight; zero for padded rows.
    lhs = jnp.concatenate([lhs, jnp.ones((B, PH, 1), jnp.float32)], axis=-1)
    lhs = jnp.pad(lhs, ((0, 0), (0, PHp - PH), (0, Kp - Kraw - 1)))
    lhs = lhs.reshape(M, Kp).astype(jnp.bfloat16)        # pre-cast to bf16

    # Banded conv weight: folds the kW taps into the (Kraw, CWo) matmul.
    # wbig[(kt*kH+kh)*CW + cin*W + w_in, cout*Wop + wo]
    #     = conv_w[cout, cin, kt, kh, w_in - wo]   (0 <= w_in-wo < kW, else 0)
    sel = np.zeros((kW, W, Wop), np.float32)
    for kw in range(kW):
        for wo in range(Wo):
            sel[kw, wo + kw, wo] = 1.0
    sel = jnp.asarray(sel)
    wo_mask = (jnp.arange(Wop) < Wo).astype(jnp.float32)            # (Wop,)
    wbig = jnp.einsum("ocijk,kwv->ijcwov", conv_w, sel).reshape(Kraw, CWo)
    brow = (conv_b[:, None] * wo_mask[None, :]).reshape(1, CWo)     # bias row
    wbig = jnp.concatenate([wbig, brow], axis=0)                    # (Kraw+1, CWo)
    wbig = jnp.pad(wbig, ((0, Kp - Kraw - 1), (0, 0))).astype(jnp.bfloat16)

    # Head weight broadcast over wo (sums the wo axis inside the head matmul).
    # NOTE: no 1/Npos fold here — the pooling scale is applied in f32 in-kernel.
    hbig = (head_w[:, None, :] * wo_mask[None, :, None]).reshape(CWo, n_out)
    hbig = jnp.pad(hbig, ((0, 0), (0, NOUTP - n_out))).astype(jnp.bfloat16)
    hbrow = jnp.pad(head_b, (0, NOUTP - n_out)).reshape(1, NOUTP)   # f32

    inv_npos = 1.0 / float(Npos)        # Python constant, applied in f32

    def kernel(lhs_ref, w_ref, hbig_ref, hb_ref, o_ref):
        # Stem conv + bias as ONE (M, Kp) x (Kp, CWo) MXU matmul, f32 acc.
        conv = jnp.dot(lhs_ref[...], w_ref[...],
                       preferred_element_type=jnp.float32)          # (M, CWo)
        relu = jnp.maximum(conv, 0.0)
        # Global-avg-pool: per-batch row sums (sublane-aligned static slices;
        # padded rows are exactly zero), wo-sum folded into the head matmul.
        parts = [jnp.sum(relu[b * PHp:(b + 1) * PHp, :],
                         axis=0, keepdims=True) for b in range(B)]
        pooled = jnp.concatenate(parts, axis=0) if B > 1 else parts[0]
        pooled = pooled * inv_npos                                   # f32 scale
        # 400-way head matmul + bias, lane-dense NOUTP output.
        logits = jnp.dot(pooled.astype(jnp.bfloat16), hbig_ref[...],
                         preferred_element_type=jnp.float32) + hb_ref[...]
        o_ref[...] = logits                                          # (B, NOUTP)

    out = pl.pallas_call(
        kernel,
        out_shape=jax.ShapeDtypeStruct((B, NOUTP), jnp.float32),
        grid=(1,),
        in_specs=[
            pl.BlockSpec((M, Kp), lambda i: (0, 0)),
            pl.BlockSpec((Kp, CWo), lambda i: (0, 0)),
            pl.BlockSpec((CWo, NOUTP), lambda i: (0, 0)),
            pl.BlockSpec((1, NOUTP), lambda i: (0, 0)),
        ],
        out_specs=pl.BlockSpec((B, NOUTP), lambda i: (0, 0)),
        compiler_params=pltpu.CompilerParams(
            dimension_semantics=("arbitrary",)),
    )(lhs, wbig, hbig, hbrow)

    logits = out[:, :n_out]             # drop lane padding -> (B, 400)
    return logits.T                     # PyTorch forward: x.transpose(0, 1)


# -------------------- pure-JAX reference --------------------

def cnn3d_reference(x, conv_w, conv_b, head_w, head_b):
    x = x.astype(jnp.float32)
    y = lax.conv_general_dilated(
        x, conv_w, window_strides=(1, 1, 1), padding="VALID",
        dimension_numbers=("NCDHW", "OIDHW", "NCDHW"))
    y = jnp.maximum(y + conv_b[None, :, None, None, None], 0.0)
    pooled = jnp.mean(y, axis=(2, 3, 4))               # (B, Cout)
    logits = pooled @ head_w + head_b                  # (B, 400)
    return logits.T                                    # (400, B)


# -------------------- main --------------------

if __name__ == "__main__":
    # Small shapes consistent with the module: in_channels=4
    # (reshape_conv_input_size requires 1 or >=4), 8-frame clip at 16x16,
    # batch 2, stem conv kernel (3,3,3) with 32 channels,
    # n_out_features = 400.
    B, Cin, T, H, W = 2, 4, 8, 16, 16
    Cout, kT, kH, kW = 32, 3, 3, 3
    N_OUT = 400

    key = jax.random.PRNGKey(0)
    kx, kw1, kb1, kw2, kb2 = jax.random.split(key, 5)

    x = jax.random.normal(kx, (B, Cin, T, H, W), dtype=jnp.float32)
    # Stem conv weight: deterministic init standing in for the pretrained
    # 3-channel weight + the extra channel concatenated by
    # reshape_conv_input_size (uninitialized in PyTorch).
    conv_w = 0.05 * jax.random.normal(kw1, (Cout, Cin, kT, kH, kW), jnp.float32)
    conv_b = 0.01 * jax.random.normal(kb1, (Cout,), jnp.float32)
    head_w = 0.05 * jax.random.normal(kw2, (Cout, N_OUT), jnp.float32)
    head_b = 0.01 * jax.random.normal(kb2, (N_OUT,), jnp.float32)

    fwd = jax.jit(cnn3d_forward)
    out = jax.block_until_ready(fwd(x, conv_w, conv_b, head_w, head_b))
    assert out.shape == (N_OUT, B), out.shape

    ref = cnn3d_reference(x, conv_w, conv_b, head_w, head_b)
    np.testing.assert_allclose(np.asarray(out), np.asarray(ref),
                               rtol=2e-2, atol=2e-2)

    print("KERNEL_OK")
</pallas_src>

<mosaic_0001>
module attributes {stable_mosaic.version = 11 : i64} {
  func.func @kernel(%arg0: i32, %arg1: memref<176x640xbf16, #tpu.memory_space<vmem>>, %arg2: memref<640x512xbf16, #tpu.memory_space<vmem>>, %arg3: memref<512x512xbf16, #tpu.memory_space<vmem>>, %arg4: memref<1x512xf32, #tpu.memory_space<vmem>>, %arg5: memref<2x512xf32, #tpu.memory_space<vmem>>) attributes {dimension_semantics = [#tpu.dimension_semantics<arbitrary>], iteration_bounds = array<i64: 1>, scalar_prefetch = 0 : i64, scratch_operands = 0 : i64, tpu.core_type = #tpu.core_type<tc>, window_params = [{pipeline_mode = #tpu.pipeline_mode<synchronous>, transform_indices = @transform_0, window_bounds = array<i64: 176, 640>}, {pipeline_mode = #tpu.pipeline_mode<synchronous>, transform_indices = @transform_1, window_bounds = array<i64: 640, 512>}, {pipeline_mode = #tpu.pipeline_mode<synchronous>, transform_indices = @transform_2, window_bounds = array<i64: 512, 512>}, {pipeline_mode = #tpu.pipeline_mode<synchronous>, transform_indices = @transform_3, window_bounds = array<i64: 1, 512>}, {pipeline_mode = #tpu.pipeline_mode<synchronous>, transform_indices = @transform_4, window_bounds = array<i64: 2, 512>}]} {
    %c0 = arith.constant 0 : index
    %c0_0 = arith.constant 0 : index
    %0 = vector.load %arg1[%c0, %c0_0] : memref<176x640xbf16, #tpu.memory_space<vmem>>, vector<176x640xbf16>
    %c0_1 = arith.constant 0 : index
    %c0_2 = arith.constant 0 : index
    %1 = vector.load %arg2[%c0_1, %c0_2] : memref<640x512xbf16, #tpu.memory_space<vmem>>, vector<640x512xbf16>
    %cst = arith.constant dense<0.000000e+00> : vector<176x512xf32>
    %2 = tpu.matmul %0, %1, %cst {dimension_numbers = #tpu.dot_dimension_numbers<[1], [0], [0], [1], [0, 0, 1, 1], [], []>} : vector<176x640xbf16>, vector<640x512xbf16>, vector<176x512xf32> -> vector<176x512xf32>
    %cst_3 = arith.constant 0.000000e+00 : f32
    %3 = vector.broadcast %cst_3 : f32 to vector<176x512xf32>
    %4 = arith.maximumf %2, %3 : vector<176x512xf32>
    %5 = vector.extract_strided_slice %4 {offsets = [0, 0], sizes = [88, 512], strides = [1, 1]} : vector<176x512xf32> to vector<88x512xf32>
    %cst_4 = arith.constant dense<0.000000e+00> : vector<512xf32>
    %6 = vector.multi_reduction <add>, %5, %cst_4 [0] : vector<88x512xf32> to vector<512xf32>
    %7 = vector.shape_cast %6 : vector<512xf32> to vector<1x512xf32>
    %8 = vector.extract_strided_slice %4 {offsets = [88, 0], sizes = [88, 512], strides = [1, 1]} : vector<176x512xf32> to vector<88x512xf32>
    %cst_5 = arith.constant dense<0.000000e+00> : vector<512xf32>
    %9 = vector.multi_reduction <add>, %8, %cst_5 [0] : vector<88x512xf32> to vector<512xf32>
    %10 = vector.shape_cast %9 : vector<512xf32> to vector<1x512xf32>
    %11 = tpu.concatenate %7, %10 in 0 : vector<1x512xf32>, vector<1x512xf32> -> vector<2x512xf32>
    %cst_6 = arith.constant 8.50340118E-4 : f32
    %12 = vector.broadcast %cst_6 : f32 to vector<2x512xf32>
    %13 = arith.mulf %11, %12 : vector<2x512xf32>
    %14 = arith.truncf %13 : vector<2x512xf32> to vector<2x512xbf16>
    %c0_7 = arith.constant 0 : index
    %c0_8 = arith.constant 0 : index
    %15 = vector.load %arg3[%c0_7, %c0_8] : memref<512x512xbf16, #tpu.memory_space<vmem>>, vector<512x512xbf16>
    %cst_9 = arith.constant dense<0.000000e+00> : vector<2x512xf32>
    %16 = tpu.matmul %14, %15, %cst_9 {dimension_numbers = #tpu.dot_dimension_numbers<[1], [0], [0], [1], [0, 0, 1, 1], [], []>} : vector<2x512xbf16>, vector<512x512xbf16>, vector<2x512xf32> -> vector<2x512xf32>
    %c0_10 = arith.constant 0 : index
    %c0_11 = arith.constant 0 : index
    %17 = vector.load %arg4[%c0_10, %c0_11] : memref<1x512xf32, #tpu.memory_space<vmem>>, vector<1x512xf32>
    %18 = vector.broadcast %17 : vector<1x512xf32> to vector<2x512xf32>
    %19 = arith.addf %16, %18 : vector<2x512xf32>
    %c0_12 = arith.constant 0 : index
    %c0_13 = arith.constant 0 : index
    %20 = vector.load %arg5[%c0_12, %c0_13] : memref<2x512xf32, #tpu.memory_space<vmem>>, vector<2x512xf32>
    tpu.vector_store %arg5[%c0_12, %c0_13], %19 {strides = array<i32>} : memref<2x512xf32, #tpu.memory_space<vmem>>, vector<2x512xf32>,
    return
  }
  func.func @transform_0(%arg0: i32) -> (i32, i32) {
    %c0_i32 = arith.constant 0 : i32
    %c0_i32_0 = arith.constant 0 : i32
    %c0_i32_1 = arith.constant 0 : i32
    return %c0_i32, %c0_i32_0 : i32, i32
  }
  func.func @transform_1(%arg0: i32) -> (i32, i32) {
    %c0_i32 = arith.constant 0 : i32
    %c0_i32_0 = arith.constant 0 : i32
    %c0_i32_1 = arith.constant 0 : i32
    return %c0_i32, %c0_i32_0 : i32, i32
  }
  func.func @transform_2(%arg0: i32) -> (i32, i32) {
    %c0_i32 = arith.constant 0 : i32
    %c0_i32_0 = arith.constant 0 : i32
    %c0_i32_1 = arith.constant 0 : i32
    return %c0_i32, %c0_i32_0 : i32, i32
  }
  func.func @transform_3(%arg0: i32) -> (i32, i32) {
    %c0_i32 = arith.constant 0 : i32
    %c0_i32_0 = arith.constant 0 : i32
    %c0_i32_1 = arith.constant 0 : i32
    return %c0_i32, %c0_i32_0 : i32, i32
  }
  func.func @transform_4(%arg0: i32) -> (i32, i32) {
    %c0_i32 = arith.constant 0 : i32
    %c0_i32_0 = arith.constant 0 : i32
    %c0_i32_1 = arith.constant 0 : i32
    return %c0_i32, %c0_i32_0 : i32, i32
  }
}

</mosaic_0001>

<llo_original>
// kernel: cnn3d_forward.1
$region0: #{cnn3d_forward.1}
  #allocation0 [shape = 'u32[]', space=smem, size = 0x4, offset = 0x4, fixed_abs, tag = 'smem constant byte address 0x4 - core index']
  #allocation1 [shape = 'u32[144,128]{1,0:T(1,128)}', space=vmem, size = 0x12000, scoped, tag = 'internal scratch']
  %s0 = inlined_call_operand.vmem [shape: bf16[176,640], index: 0, kind: input, shape index: {}]
  %s1 = inlined_call_operand.vmem [shape: bf16[640,512], index: 1, kind: input, shape index: {}]
  %s2 = inlined_call_operand.vmem [shape: bf16[512,512], index: 2, kind: input, shape index: {}]
  %s3 = inlined_call_operand.vmem [shape: f32[1,512], index: 3, kind: input, shape index: {}]
  %s4 = inlined_call_operand.vmem [shape: f32[2,512], index: 4, kind: output, shape index: {}]
  %s5 = sld [smem:[#allocation0]]
  $region26: #{cnn3d_forward.1} parent=0
    _
  %s7 = ssub.s32 1, %s5
  %s8 = scalar_select 0, %s7, %s5
  // Predicated region
  $region2: #{cnn3d_forward.1} parent=0 // pred_check
    _
  $region3: #{cnn3d_forward.1} parent=0 // pred_check_branch
    %10 = sbr.rel (0) target = $region5
  $region4: #{cnn3d_forward.1} parent=0 // pred_region
    _
  $region5: #{cnn3d_forward.1} parent=0 // pred_fallthru
    _
  // Predicated region
  $region6: #{cnn3d_forward.1} parent=0 // pred_check
    _
  $region7: #{cnn3d_forward.1} parent=0 // pred_check_branch
    %12 = sbr.rel (0) target = $region9
  $region8: #{cnn3d_forward.1} parent=0 // pred_region
    _
  $region9: #{cnn3d_forward.1} parent=0 // pred_fallthru
    _
  // Predicated region
  $region10: #{cnn3d_forward.1} parent=0 // pred_check
    _
  $region11: #{cnn3d_forward.1} parent=0 // pred_check_branch
    %14 = sbr.rel (0) target = $region13
  $region12: #{cnn3d_forward.1} parent=0 // pred_region
    _
  $region13: #{cnn3d_forward.1} parent=0 // pred_fallthru
    _
  // Predicated region
  $region14: #{cnn3d_forward.1} parent=0 // pred_check
    _
  $region15: #{cnn3d_forward.1} parent=0 // pred_check_branch
    %16 = sbr.rel (0) target = $region17
  $region16: #{cnn3d_forward.1} parent=0 // pred_region
    _
  $region17: #{cnn3d_forward.1} parent=0 // pred_fallthru
    _
  %v18 = vld [vmem:[%s0] sm:$0xff]
  %v19 = vld [vmem:[%s0 + $0x8] sm:$0xff]
  %v20 = vld [vmem:[%s0 + $0x10] sm:$0xf]
  %v21 = vld [vmem:[%s0 + $0x14] sm:$0xff]
  %v22 = vld [vmem:[%s0 + $0x1c] sm:$0xff]
  %v23 = vld [vmem:[%s0 + $0x24] sm:$0xf]
  %v24 = vld [vmem:[%s0 + $0x28] sm:$0xff]
  %v25 = vld [vmem:[%s0 + $0x30] sm:$0xff]
  %v26 = vld [vmem:[%s0 + $0x38] sm:$0xf]
  %v27 = vld [vmem:[%s0 + $0x3c] sm:$0xff]
  %v28 = vld [vmem:[%s0 + $0x44] sm:$0xff]
  %v29 = vld [vmem:[%s0 + $0x4c] sm:$0xf]
  %v30 = vld [vmem:[%s0 + $0x50] sm:$0xff]
  %v31 = vld [vmem:[%s0 + $0x58] sm:$0xff]
  %v32 = vld [vmem:[%s0 + $0x60] sm:$0xf]
  %v33 = vld [vmem:[%s0 + $0x64] sm:$0xff]
  %v34 = vld [vmem:[%s0 + $0x6c] sm:$0xff]
  %v35 = vld [vmem:[%s0 + $0x74] sm:$0xf]
  %v36 = vld [vmem:[%s0 + $0x78] sm:$0xff]
  %v37 = vld [vmem:[%s0 + $0x80] sm:$0xff]
  %v38 = vld [vmem:[%s0 + $0x88] sm:$0xf]
  %v39 = vld [vmem:[%s0 + $0x8c] sm:$0xff]
  %v40 = vld [vmem:[%s0 + $0x94] sm:$0xff]
  %v41 = vld [vmem:[%s0 + $0x9c] sm:$0xf]
  %v42 = vld [vmem:[%s0 + $0xa0] sm:$0xff]
  %v43 = vld [vmem:[%s0 + $0xa8] sm:$0xff]
  %v44 = vld [vmem:[%s0 + $0xb0] sm:$0xf]
  %v45 = vld [vmem:[%s0 + $0xb4] sm:$0xff]
  %v46 = vld [vmem:[%s0 + $0xbc] sm:$0xff]
  %v47 = vld [vmem:[%s0 + $0xc4] sm:$0xf]
  %v48 = vld [vmem:[%s0 + $0xc8] sm:$0xff]
  %v49 = vld [vmem:[%s0 + $0xd0] sm:$0xff]
  %v50 = vld [vmem:[%s0 + $0xd8] sm:$0xf]
  %v51 = vld [vmem:[%s0 + $0xdc] sm:$0xff]
  %v52 = vld [vmem:[%s0 + $0xe4] sm:$0xff]
  %v53 = vld [vmem:[%s0 + $0xec] sm:$0xf]
  %v54 = vld [vmem:[%s0 + $0xf0] sm:$0xff]
  %v55 = vld [vmem:[%s0 + $0xf8] sm:$0xff]
  %v56 = vld [vmem:[%s0 + $0x100] sm:$0xf]
  %v57 = vld [vmem:[%s0 + $0x104] sm:$0xff]
  %v58 = vld [vmem:[%s0 + $0x10c] sm:$0xff]
  %v59 = vld [vmem:[%s0 + $0x114] sm:$0xf]
  %v60 = vld [vmem:[%s0 + $0x118] sm:$0xff]
  %v61 = vld [vmem:[%s0 + $0x120] sm:$0xff]
  %v62 = vld [vmem:[%s0 + $0x128] sm:$0xf]
  %v63 = vld [vmem:[%s0 + $0x12c] sm:$0xff]
  %v64 = vld [vmem:[%s0 + $0x134] sm:$0xff]
  %v65 = vld [vmem:[%s0 + $0x13c] sm:$0xf]
  %v66 = vld [vmem:[%s0 + $0x140] sm:$0xff]
  %v67 = vld [vmem:[%s0 + $0x148] sm:$0xff]
  %v68 = vld [vmem:[%s0 + $0x150] sm:$0xf]
  %v69 = vld [vmem:[%s0 + $0x154] sm:$0xff]
  %v70 = vld [vmem:[%s0 + $0x15c] sm:$0xff]
  %v71 = vld [vmem:[%s0 + $0x164] sm:$0xf]
  %v72 = vld [vmem:[%s0 + $0x168] sm:$0xff]
  %v73 = vld [vmem:[%s0 + $0x170] sm:$0xff]
  %v74 = vld [vmem:[%s0 + $0x178] sm:$0xf]
  %v75 = vld [vmem:[%s0 + $0x17c] sm:$0xff]
  %v76 = vld [vmem:[%s0 + $0x184] sm:$0xff]
  %v77 = vld [vmem:[%s0 + $0x18c] sm:$0xf]
  %v78 = vld [vmem:[%s0 + $0x190] sm:$0xff]
  %v79 = vld [vmem:[%s0 + $0x198] sm:$0xff]
  %v80 = vld [vmem:[%s0 + $0x1a0] sm:$0xf]
  %v81 = vld [vmem:[%s0 + $0x1a4] sm:$0xff]
  %v82 = vld [vmem:[%s0 + $0x1ac] sm:$0xff]
  %v83 = vld [vmem:[%s0 + $0x1b4] sm:$0xf]
  %v84 = vld [vmem:[%s1] sm:$0xff]
  %v85 = vld [vmem:[%s1 + $0x8] sm:$0xff]
  %v86 = vld [vmem:[%s1 + $0x10] sm:$0xff]
  %v87 = vld [vmem:[%s1 + $0x18] sm:$0xff]
  %v88 = vld [vmem:[%s1 + $0x20] sm:$0xff]
  %v89 = vld [vmem:[%s1 + $0x28] sm:$0xff]
  %v90 = vld [vmem:[%s1 + $0x30] sm:$0xff]
  %v91 = vld [vmem:[%s1 + $0x38] sm:$0xff]
  %v92 = vld [vmem:[%s1 + $0x40] sm:$0xff]
  %v93 = vld [vmem:[%s1 + $0x48] sm:$0xff]
  %v94 = vld [vmem:[%s1 + $0x50] sm:$0xff]
  %v95 = vld [vmem:[%s1 + $0x58] sm:$0xff]
  %v96 = vld [vmem:[%s1 + $0x60] sm:$0xff]
  %v97 = vld [vmem:[%s1 + $0x68] sm:$0xff]
  %v98 = vld [vmem:[%s1 + $0x70] sm:$0xff]
  %v99 = vld [vmem:[%s1 + $0x78] sm:$0xff]
  %v100 = vld [vmem:[%s1 + $0x80] sm:$0xff]
  %v101 = vld [vmem:[%s1 + $0x88] sm:$0xff]
  %v102 = vld [vmem:[%s1 + $0x90] sm:$0xff]
  %v103 = vld [vmem:[%s1 + $0x98] sm:$0xff]
  %v104 = vld [vmem:[%s1 + $0xa0] sm:$0xff]
  %v105 = vld [vmem:[%s1 + $0xa8] sm:$0xff]
  %v106 = vld [vmem:[%s1 + $0xb0] sm:$0xff]
  %v107 = vld [vmem:[%s1 + $0xb8] sm:$0xff]
  %v108 = vld [vmem:[%s1 + $0xc0] sm:$0xff]
  %v109 = vld [vmem:[%s1 + $0xc8] sm:$0xff]
  %v110 = vld [vmem:[%s1 + $0xd0] sm:$0xff]
  %v111 = vld [vmem:[%s1 + $0xd8] sm:$0xff]
  %v112 = vld [vmem:[%s1 + $0xe0] sm:$0xff]
  %v113 = vld [vmem:[%s1 + $0xe8] sm:$0xff]
  %v114 = vld [vmem:[%s1 + $0xf0] sm:$0xff]
  %v115 = vld [vmem:[%s1 + $0xf8] sm:$0xff]
  %v116 = vld [vmem:[%s1 + $0x100] sm:$0xff]
  %v117 = vld [vmem:[%s1 + $0x108] sm:$0xff]
  %v118 = vld [vmem:[%s1 + $0x110] sm:$0xff]
  %v119 = vld [vmem:[%s1 + $0x118] sm:$0xff]
  %v120 = vld [vmem:[%s1 + $0x120] sm:$0xff]
  %v121 = vld [vmem:[%s1 + $0x128] sm:$0xff]
  %v122 = vld [vmem:[%s1 + $0x130] sm:$0xff]
  %v123 = vld [vmem:[%s1 + $0x138] sm:$0xff]
  %v124 = vld [vmem:[%s1 + $0x140] sm:$0xff]
  %v125 = vld [vmem:[%s1 + $0x148] sm:$0xff]
  %v126 = vld [vmem:[%s1 + $0x150] sm:$0xff]
  %v127 = vld [vmem:[%s1 + $0x158] sm:$0xff]
  %v128 = vld [vmem:[%s1 + $0x160] sm:$0xff]
  %v129 = vld [vmem:[%s1 + $0x168] sm:$0xff]
  %v130 = vld [vmem:[%s1 + $0x170] sm:$0xff]
  %v131 = vld [vmem:[%s1 + $0x178] sm:$0xff]
  %v132 = vld [vmem:[%s1 + $0x180] sm:$0xff]
  %v133 = vld [vmem:[%s1 + $0x188] sm:$0xff]
  %v134 = vld [vmem:[%s1 + $0x190] sm:$0xff]
  %v135 = vld [vmem:[%s1 + $0x198] sm:$0xff]
  %v136 = vld [vmem:[%s1 + $0x1a0] sm:$0xff]
  %v137 = vld [vmem:[%s1 + $0x1a8] sm:$0xff]
  %v138 = vld [vmem:[%s1 + $0x1b0] sm:$0xff]
  %v139 = vld [vmem:[%s1 + $0x1b8] sm:$0xff]
  %v140 = vld [vmem:[%s1 + $0x1c0] sm:$0xff]
  %v141 = vld [vmem:[%s1 + $0x1c8] sm:$0xff]
  %v142 = vld [vmem:[%s1 + $0x1d0] sm:$0xff]
  %v143 = vld [vmem:[%s1 + $0x1d8] sm:$0xff]
  %v144 = vld [vmem:[%s1 + $0x1e0] sm:$0xff]
  %v145 = vld [vmem:[%s1 + $0x1e8] sm:$0xff]
  %v146 = vld [vmem:[%s1 + $0x1f0] sm:$0xff]
  %v147 = vld [vmem:[%s1 + $0x1f8] sm:$0xff]
  %v148 = vld [vmem:[%s1 + $0x200] sm:$0xff]
  %v149 = vld [vmem:[%s1 + $0x208] sm:$0xff]
  %v150 = vld [vmem:[%s1 + $0x210] sm:$0xff]
  %v151 = vld [vmem:[%s1 + $0x218] sm:$0xff]
  %v152 = vld [vmem:[%s1 + $0x220] sm:$0xff]
  %v153 = vld [vmem:[%s1 + $0x228] sm:$0xff]
  %v154 = vld [vmem:[%s1 + $0x230] sm:$0xff]
  %v155 = vld [vmem:[%s1 + $0x238] sm:$0xff]
  %v156 = vld [vmem:[%s1 + $0x240] sm:$0xff]
  %v157 = vld [vmem:[%s1 + $0x248] sm:$0xff]
  %v158 = vld [vmem:[%s1 + $0x250] sm:$0xff]
  %v159 = vld [vmem:[%s1 + $0x258] sm:$0xff]
  %v160 = vld [vmem:[%s1 + $0x260] sm:$0xff]
  %v161 = vld [vmem:[%s1 + $0x268] sm:$0xff]
  %v162 = vld [vmem:[%s1 + $0x270] sm:$0xff]
  %v163 = vld [vmem:[%s1 + $0x278] sm:$0xff]
  %v164 = vld [vmem:[%s1 + $0x280] sm:$0xff]
  %v165 = vld [vmem:[%s1 + $0x288] sm:$0xff]
  %v166 = vld [vmem:[%s1 + $0x290] sm:$0xff]
  %v167 = vld [vmem:[%s1 + $0x298] sm:$0xff]
  %v168 = vld [vmem:[%s1 + $0x2a0] sm:$0xff]
  %v169 = vld [vmem:[%s1 + $0x2a8] sm:$0xff]
  %v170 = vld [vmem:[%s1 + $0x2b0] sm:$0xff]
  %v171 = vld [vmem:[%s1 + $0x2b8] sm:$0xff]
  %v172 = vld [vmem:[%s1 + $0x2c0] sm:$0xff]
  %v173 = vld [vmem:[%s1 + $0x2c8] sm:$0xff]
  %v174 = vld [vmem:[%s1 + $0x2d0] sm:$0xff]
  %v175 = vld [vmem:[%s1 + $0x2d8] sm:$0xff]
  %v176 = vld [vmem:[%s1 + $0x2e0] sm:$0xff]
  %v177 = vld [vmem:[%s1 + $0x2e8] sm:$0xff]
  %v178 = vld [vmem:[%s1 + $0x2f0] sm:$0xff]
  %v179 = vld [vmem:[%s1 + $0x2f8] sm:$0xff]
  %v180 = vld [vmem:[%s1 + $0x300] sm:$0xff]
  %v181 = vld [vmem:[%s1 + $0x308] sm:$0xff]
  %v182 = vld [vmem:[%s1 + $0x310] sm:$0xff]
  %v183 = vld [vmem:[%s1 + $0x318] sm:$0xff]
  %v184 = vld [vmem:[%s1 + $0x320] sm:$0xff]
  %v185 = vld [vmem:[%s1 + $0x328] sm:$0xff]
  %v186 = vld [vmem:[%s1 + $0x330] sm:$0xff]
  %v187 = vld [vmem:[%s1 + $0x338] sm:$0xff]
  %v188 = vld [vmem:[%s1 + $0x340] sm:$0xff]
  %v189 = vld [vmem:[%s1 + $0x348] sm:$0xff]
  %v190 = vld [vmem:[%s1 + $0x350] sm:$0xff]
  %v191 = vld [vmem:[%s1 + $0x358] sm:$0xff]
  %v192 = vld [vmem:[%s1 + $0x360] sm:$0xff]
  %v193 = vld [vmem:[%s1 + $0x368] sm:$0xff]
  %v194 = vld [vmem:[%s1 + $0x370] sm:$0xff]
  %v195 = vld [vmem:[%s1 + $0x378] sm:$0xff]
  %v196 = vld [vmem:[%s1 + $0x380] sm:$0xff]
  %v197 = vld [vmem:[%s1 + $0x388] sm:$0xff]
  %v198 = vld [vmem:[%s1 + $0x390] sm:$0xff]
  %v199 = vld [vmem:[%s1 + $0x398] sm:$0xff]
  %v200 = vld [vmem:[%s1 + $0x3a0] sm:$0xff]
  %v201 = vld [vmem:[%s1 + $0x3a8] sm:$0xff]
  %v202 = vld [vmem:[%s1 + $0x3b0] sm:$0xff]
  %v203 = vld [vmem:[%s1 + $0x3b8] sm:$0xff]
  %v204 = vld [vmem:[%s1 + $0x3c0] sm:$0xff]
  %v205 = vld [vmem:[%s1 + $0x3c8] sm:$0xff]
  %v206 = vld [vmem:[%s1 + $0x3d0] sm:$0xff]
  %v207 = vld [vmem:[%s1 + $0x3d8] sm:$0xff]
  %v208 = vld [vmem:[%s1 + $0x3e0] sm:$0xff]
  %v209 = vld [vmem:[%s1 + $0x3e8] sm:$0xff]
  %v210 = vld [vmem:[%s1 + $0x3f0] sm:$0xff]
  %v211 = vld [vmem:[%s1 + $0x3f8] sm:$0xff]
  %v212 = vld [vmem:[%s1 + $0x400] sm:$0xff]
  %v213 = vld [vmem:[%s1 + $0x408] sm:$0xff]
  %v214 = vld [vmem:[%s1 + $0x410] sm:$0xff]
  %v215 = vld [vmem:[%s1 + $0x418] sm:$0xff]
  %v216 = vld [vmem:[%s1 + $0x420] sm:$0xff]
  %v217 = vld [vmem:[%s1 + $0x428] sm:$0xff]
  %v218 = vld [vmem:[%s1 + $0x430] sm:$0xff]
  %v219 = vld [vmem:[%s1 + $0x438] sm:$0xff]
  %v220 = vld [vmem:[%s1 + $0x440] sm:$0xff]
  %v221 = vld [vmem:[%s1 + $0x448] sm:$0xff]
  %v222 = vld [vmem:[%s1 + $0x450] sm:$0xff]
  %v223 = vld [vmem:[%s1 + $0x458] sm:$0xff]
  %v224 = vld [vmem:[%s1 + $0x460] sm:$0xff]
  %v225 = vld [vmem:[%s1 + $0x468] sm:$0xff]
  %v226 = vld [vmem:[%s1 + $0x470] sm:$0xff]
  %v227 = vld [vmem:[%s1 + $0x478] sm:$0xff]
  %v228 = vld [vmem:[%s1 + $0x480] sm:$0xff]
  %v229 = vld [vmem:[%s1 + $0x488] sm:$0xff]
  %v230 = vld [vmem:[%s1 + $0x490] sm:$0xff]
  %v231 = vld [vmem:[%s1 + $0x498] sm:$0xff]
  %v232 = vld [vmem:[%s1 + $0x4a0] sm:$0xff]
  %v233 = vld [vmem:[%s1 + $0x4a8] sm:$0xff]
  %v234 = vld [vmem:[%s1 + $0x4b0] sm:$0xff]
  %v235 = vld [vmem:[%s1 + $0x4b8] sm:$0xff]
  %v236 = vld [vmem:[%s1 + $0x4c0] sm:$0xff]
  %v237 = vld [vmem:[%s1 + $0x4c8] sm:$0xff]
  %v238 = vld [vmem:[%s1 + $0x4d0] sm:$0xff]
  %v239 = vld [vmem:[%s1 + $0x4d8] sm:$0xff]
  %v240 = vld [vmem:[%s1 + $0x4e0] sm:$0xff]
  %v241 = vld [vmem:[%s1 + $0x4e8] sm:$0xff]
  %v242 = vld [vmem:[%s1 + $0x4f0] sm:$0xff]
  %v243 = vld [vmem:[%s1 + $0x4f8] sm:$0xff]
  %v310 = vunpack.c.l.b16 %v18
  %v311 = vunpack.c.h.b16 %v18
  %v312 = vunpack.c.l.b16 %v19
  %v313 = vunpack.c.h.b16 %v19
  %v314 = vunpack.c.l.b16 %v20
  %v315 = vunpack.c.l.b16 %v21
  %v316 = vunpack.c.h.b16 %v21
  %v317 = vunpack.c.l.b16 %v22
  %v318 = vunpack.c.h.b16 %v22
  %v319 = vunpack.c.l.b16 %v23
  %v320 = vunpack.c.l.b16 %v24
  %v321 = vunpack.c.h.b16 %v24
  %v322 = vunpack.c.l.b16 %v25
  %v323 = vunpack.c.h.b16 %v25
  %v324 = vunpack.c.l.b16 %v26
  %v325 = vunpack.c.l.b16 %v27
  %v326 = vunpack.c.h.b16 %v27
  %v327 = vunpack.c.l.b16 %v28
  %v328 = vunpack.c.h.b16 %v28
  %v329 = vunpack.c.l.b16 %v29
  %v330 = vunpack.c.l.b16 %v30
  %v331 = vunpack.c.h.b16 %v30
  %v332 = vunpack.c.l.b16 %v31
  %v333 = vunpack.c.h.b16 %v31
  %v334 = vunpack.c.l.b16 %v32
  %v335 = vunpack.c.l.b16 %v33
  %v336 = vunpack.c.h.b16 %v33
  %v337 = vunpack.c.l.b16 %v34
  %v338 = vunpack.c.h.b16 %v34
  %v339 = vunpack.c.l.b16 %v35
  %v340 = vunpack.c.l.b16 %v36
  %v341 = vunpack.c.h.b16 %v36
  %v342 = vunpack.c.l.b16 %v37
  %v343 = vunpack.c.h.b16 %v37
  %v344 = vunpack.c.l.b16 %v38
  %v345 = vunpack.c.l.b16 %v39
  %v346 = vunpack.c.h.b16 %v39
  %v347 = vunpack.c.l.b16 %v40
  %v348 = vunpack.c.h.b16 %v40
  %v349 = vunpack.c.l.b16 %v41
  %v350 = vunpack.c.l.b16 %v42
  %v351 = vunpack.c.h.b16 %v42
  %v352 = vunpack.c.l.b16 %v43
  %v353 = vunpack.c.h.b16 %v43
  %v354 = vunpack.c.l.b16 %v44
  %v355 = vunpack.c.l.b16 %v45
  %v356 = vunpack.c.h.b16 %v45
  %v357 = vunpack.c.l.b16 %v46
  %v358 = vunpack.c.h.b16 %v46
  %v359 = vunpack.c.l.b16 %v47
  %v360 = vunpack.c.l.b16 %v48
  %v361 = vunpack.c.h.b16 %v48
  %v362 = vunpack.c.l.b16 %v49
  %v363 = vunpack.c.h.b16 %v49
  %v364 = vunpack.c.l.b16 %v50
  %v365 = vunpack.c.l.b16 %v51
  %v366 = vunpack.c.h.b16 %v51
  %v367 = vunpack.c.l.b16 %v52
  %v368 = vunpack.c.h.b16 %v52
  %v369 = vunpack.c.l.b16 %v53
  %v370 = vunpack.c.l.b16 %v54
  %v371 = vunpack.c.h.b16 %v54
  %v372 = vunpack.c.l.b16 %v55
  %v373 = vunpack.c.h.b16 %v55
  %v374 = vunpack.c.l.b16 %v56
  %v375 = vunpack.c.l.b16 %v57
  %v376 = vunpack.c.h.b16 %v57
  %v377 = vunpack.c.l.b16 %v58
  %v378 = vunpack.c.h.b16 %v58
  %v379 = vunpack.c.l.b16 %v59
  %v380 = vunpack.c.l.b16 %v60
  %v381 = vunpack.c.h.b16 %v60
  %v382 = vunpack.c.l.b16 %v61
  %v383 = vunpack.c.h.b16 %v61
  %v384 = vunpack.c.l.b16 %v62
  %v385 = vunpack.c.l.b16 %v63
  %v386 = vunpack.c.h.b16 %v63
  %v387 = vunpack.c.l.b16 %v64
  %v388 = vunpack.c.h.b16 %v64
  %v389 = vunpack.c.l.b16 %v65
  %v390 = vunpack.c.l.b16 %v66
  %v391 = vunpack.c.h.b16 %v66
  %v392 = vunpack.c.l.b16 %v67
  %v393 = vunpack.c.h.b16 %v67
  %v394 = vunpack.c.l.b16 %v68
  %v395 = vunpack.c.l.b16 %v69
  %v396 = vunpack.c.h.b16 %v69
  %v397 = vunpack.c.l.b16 %v70
  %v398 = vunpack.c.h.b16 %v70
  %v399 = vunpack.c.l.b16 %v71
  %v400 = vunpack.c.l.b16 %v72
  %v401 = vunpack.c.h.b16 %v72
  %v402 = vunpack.c.l.b16 %v73
  %v403 = vunpack.c.h.b16 %v73
  %v404 = vunpack.c.l.b16 %v74
  %v405 = vunpack.c.l.b16 %v75
  %v406 = vunpack.c.h.b16 %v75
  %v407 = vunpack.c.l.b16 %v76
  %v408 = vunpack.c.h.b16 %v76
  %v409 = vunpack.c.l.b16 %v77
  %v410 = vunpack.c.l.b16 %v78
  %v411 = vunpack.c.h.b16 %v78
  %v412 = vunpack.c.l.b16 %v79
  %v413 = vunpack.c.h.b16 %v79
  %v414 = vunpack.c.l.b16 %v80
  %v415 = vunpack.c.l.b16 %v81
  %v416 = vunpack.c.h.b16 %v81
  %v417 = vunpack.c.l.b16 %v82
  %v418 = vunpack.c.h.b16 %v82
  %v419 = vunpack.c.l.b16 %v83
  %v420 = vpack.c.b16 %v315, %v310
  %v421 = vpack.c.b16 %v316, %v311
  %v422 = vpack.c.b16 %v317, %v312
  %v423 = vpack.c.b16 %v318, %v313
  %v424 = vpack.c.b16 %v319, %v314
  %v425 = vpack.c.b16 %v325, %v320
  %v426 = vpack.c.b16 %v326, %v321
  %v427 = vpack.c.b16 %v327, %v322
  %v428 = vpack.c.b16 %v328, %v323
  %v429 = vpack.c.b16 %v329, %v324
  %v430 = vpack.c.b16 %v335, %v330
  %v431 = vpack.c.b16 %v336, %v331
  %v432 = vpack.c.b16 %v337, %v332
  %v433 = vpack.c.b16 %v338, %v333
  %v434 = vpack.c.b16 %v339, %v334
  %v435 = vpack.c.b16 %v345, %v340
  %v436 = vpack.c.b16 %v346, %v341
  %v437 = vpack.c.b16 %v347, %v342
  %v438 = vpack.c.b16 %v348, %v343
  %v439 = vpack.c.b16 %v349, %v344
  %v440 = vpack.c.b16 %v355, %v350
  %v441 = vpack.c.b16 %v356, %v351
  %v442 = vpack.c.b16 %v357, %v352
  %v443 = vpack.c.b16 %v358, %v353
  %v444 = vpack.c.b16 %v359, %v354
  %v445 = vpack.c.b16 %v365, %v360
  %v446 = vpack.c.b16 %v366, %v361
  %v447 = vpack.c.b16 %v367, %v362
  %v448 = vpack.c.b16 %v368, %v363
  %v449 = vpack.c.b16 %v369, %v364
  %v450 = vpack.c.b16 %v375, %v370
  %v451 = vpack.c.b16 %v376, %v371
  %v452 = vpack.c.b16 %v377, %v372
  %v453 = vpack.c.b16 %v378, %v373
  %v454 = vpack.c.b16 %v379, %v374
  %v455 = vpack.c.b16 %v385, %v380
  %v456 = vpack.c.b16 %v386, %v381
  %v457 = vpack.c.b16 %v387, %v382
  %v458 = vpack.c.b16 %v388, %v383
  %v459 = vpack.c.b16 %v389, %v384
  %v460 = vpack.c.b16 %v395, %v390
  %v461 = vpack.c.b16 %v396, %v391
  %v462 = vpack.c.b16 %v397, %v392
  %v463 = vpack.c.b16 %v398, %v393
  %v464 = vpack.c.b16 %v399, %v394
  %v465 = vpack.c.b16 %v405, %v400
  %v466 = vpack.c.b16 %v406, %v401
  %v467 = vpack.c.b16 %v407, %v402
  %v468 = vpack.c.b16 %v408, %v403
  %v469 = vpack.c.b16 %v409, %v404
  %v470 = vpack.c.b16 %v415, %v410
  %v471 = vpack.c.b16 %v416, %v411
  %v472 = vpack.c.b16 %v417, %v412
  %v473 = vpack.c.b16 %v418, %v413
  %v474 = vpack.c.b16 %v419, %v414
  %v690 = vunpack.c.l.b16 %v84
  %v691 = vunpack.c.h.b16 %v84
  %v692 = vunpack.c.l.b16 %v85
  %v693 = vunpack.c.h.b16 %v85
  %v694 = vunpack.c.l.b16 %v86
  %v695 = vunpack.c.h.b16 %v86
  %v696 = vunpack.c.l.b16 %v87
  %v697 = vunpack.c.h.b16 %v87
  %v698 = vunpack.c.l.b16 %v88
  %v699 = vunpack.c.h.b16 %v88
  %v700 = vunpack.c.l.b16 %v89
  %v701 = vunpack.c.h.b16 %v89
  %v702 = vunpack.c.l.b16 %v90
  %v703 = vunpack.c.h.b16 %v90
  %v704 = vunpack.c.l.b16 %v91
  %v705 = vunpack.c.h.b16 %v91
  %v706 = vunpack.c.l.b16 %v92
  %v707 = vunpack.c.h.b16 %v92
  %v708 = vunpack.c.l.b16 %v93
  %v709 = vunpack.c.h.b16 %v93
  %v710 = vunpack.c.l.b16 %v94
  %v711 = vunpack.c.h.b16 %v94
  %v712 = vunpack.c.l.b16 %v95
  %v713 = vunpack.c.h.b16 %v95
  %v714 = vunpack.c.l.b16 %v96
  %v715 = vunpack.c.h.b16 %v96
  %v716 = vunpack.c.l.b16 %v97
  %v717 = vunpack.c.h.b16 %v97
  %v718 = vunpack.c.l.b16 %v98
  %v719 = vunpack.c.h.b16 %v98
  %v720 = vunpack.c.l.b16 %v99
  %v721 = vunpack.c.h.b16 %v99
  %v722 = vunpack.c.l.b16 %v100
  %v723 = vunpack.c.h.b16 %v100
  %v724 = vunpack.c.l.b16 %v101
  %v725 = vunpack.c.h.b16 %v101
  %v726 = vunpack.c.l.b16 %v102
  %v727 = vunpack.c.h.b16 %v102
  %v728 = vunpack.c.l.b16 %v103
  %v729 = vunpack.c.h.b16 %v103
  %v730 = vunpack.c.l.b16 %v104
  %v731 = vunpack.c.h.b16 %v104
  %v732 = vunpack.c.l.b16 %v105
  %v733 = vunpack.c.h.b16 %v105
  %v734 = vunpack.c.l.b16 %v106
  %v735 = vunpack.c.h.b16 %v106
  %v736 = vunpack.c.l.b16 %v107
  %v737 = vunpack.c.h.b16 %v107
  %v738 = vunpack.c.l.b16 %v108
  %v739 = vunpack.c.h.b16 %v108
  %v740 = vunpack.c.l.b16 %v109
  %v741 = vunpack.c.h.b16 %v109
  %v742 = vunpack.c.l.b16 %v110
  %v743 = vunpack.c.h.b16 %v110
  %v744 = vunpack.c.l.b16 %v111
  %v745 = vunpack.c.h.b16 %v111
  %v746 = vunpack.c.l.b16 %v112
  %v747 = vunpack.c.h.b16 %v112
  %v748 = vunpack.c.l.b16 %v113
  %v749 = vunpack.c.h.b16 %v113
  %v750 = vunpack.c.l.b16 %v114
  %v751 = vunpack.c.h.b16 %v114
  %v752 = vunpack.c.l.b16 %v115
  %v753 = vunpack.c.h.b16 %v115
  %v754 = vunpack.c.l.b16 %v116
  %v755 = vunpack.c.h.b16 %v116
  %v756 = vunpack.c.l.b16 %v117
  %v757 = vunpack.c.h.b16 %v117
  %v758 = vunpack.c.l.b16 %v118
  %v759 = vunpack.c.h.b16 %v118
  %v760 = vunpack.c.l.b16 %v119
  %v761 = vunpack.c.h.b16 %v119
  %v762 = vunpack.c.l.b16 %v120
  %v763 = vunpack.c.h.b16 %v120
  %v764 = vunpack.c.l.b16 %v121
  %v765 = vunpack.c.h.b16 %v121
  %v766 = vunpack.c.l.b16 %v122
  %v767 = vunpack.c.h.b16 %v122
  %v768 = vunpack.c.l.b16 %v123
  %v769 = vunpack.c.h.b16 %v123
  %v770 = vunpack.c.l.b16 %v124
  %v771 = vunpack.c.h.b16 %v124
  %v772 = vunpack.c.l.b16 %v125
  %v773 = vunpack.c.h.b16 %v125
  %v774 = vunpack.c.l.b16 %v126
  %v775 = vunpack.c.h.b16 %v126
  %v776 = vunpack.c.l.b16 %v127
  %v777 = vunpack.c.h.b16 %v127
  %v778 = vunpack.c.l.b16 %v128
  %v779 = vunpack.c.h.b16 %v128
  %v780 = vunpack.c.l.b16 %v129
  %v781 = vunpack.c.h.b16 %v129
  %v782 = vunpack.c.l.b16 %v130
  %v783 = vunpack.c.h.b16 %v130
  %v784 = vunpack.c.l.b16 %v131
  %v785 = vunpack.c.h.b16 %v131
  %v786 = vunpack.c.l.b16 %v132
  %v787 = vunpack.c.h.b16 %v132
  %v788 = vunpack.c.l.b16 %v133
  %v789 = vunpack.c.h.b16 %v133
  %v790 = vunpack.c.l.b16 %v134
  %v791 = vunpack.c.h.b16 %v134
  %v792 = vunpack.c.l.b16 %v135
  %v793 = vunpack.c.h.b16 %v135
  %v794 = vunpack.c.l.b16 %v136
  %v795 = vunpack.c.h.b16 %v136
  %v796 = vunpack.c.l.b16 %v137
  %v797 = vunpack.c.h.b16 %v137
  %v798 = vunpack.c.l.b16 %v138
  %v799 = vunpack.c.h.b16 %v138
  %v800 = vunpack.c.l.b16 %v139
  %v801 = vunpack.c.h.b16 %v139
  %v802 = vunpack.c.l.b16 %v140
  %v803 = vunpack.c.h.b16 %v140
  %v804 = vunpack.c.l.b16 %v141
  %v805 = vunpack.c.h.b16 %v141
  %v806 = vunpack.c.l.b16 %v142
  %v807 = vunpack.c.h.b16 %v142
  %v808 = vunpack.c.l.b16 %v143
  %v809 = vunpack.c.h.b16 %v143
  %v810 = vunpack.c.l.b16 %v144
  %v811 = vunpack.c.h.b16 %v144
  %v812 = vunpack.c.l.b16 %v145
  %v813 = vunpack.c.h.b16 %v145
  %v814 = vunpack.c.l.b16 %v146
  %v815 = vunpack.c.h.b16 %v146
  %v816 = vunpack.c.l.b16 %v147
  %v817 = vunpack.c.h.b16 %v147
  %v818 = vunpack.c.l.b16 %v148
  %v819 = vunpack.c.h.b16 %v148
  %v820 = vunpack.c.l.b16 %v149
  %v821 = vunpack.c.h.b16 %v149
  %v822 = vunpack.c.l.b16 %v150
  %v823 = vunpack.c.h.b16 %v150
  %v824 = vunpack.c.l.b16 %v151
  %v825 = vunpack.c.h.b16 %v151
  %v826 = vunpack.c.l.b16 %v152
  %v827 = vunpack.c.h.b16 %v152
  %v828 = vunpack.c.l.b16 %v153
  %v829 = vunpack.c.h.b16 %v153
  %v830 = vunpack.c.l.b16 %v154
  %v831 = vunpack.c.h.b16 %v154
  %v832 = vunpack.c.l.b16 %v155
  %v833 = vunpack.c.h.b16 %v155
  %v834 = vunpack.c.l.b16 %v156
  %v835 = vunpack.c.h.b16 %v156
  %v836 = vunpack.c.l.b16 %v157
  %v837 = vunpack.c.h.b16 %v157
  %v838 = vunpack.c.l.b16 %v158
  %v839 = vunpack.c.h.b16 %v158
  %v840 = vunpack.c.l.b16 %v159
  %v841 = vunpack.c.h.b16 %v159
  %v842 = vunpack.c.l.b16 %v160
  %v843 = vunpack.c.h.b16 %v160
  %v844 = vunpack.c.l.b16 %v161
  %v845 = vunpack.c.h.b16 %v161
  %v846 = vunpack.c.l.b16 %v162
  %v847 = vunpack.c.h.b16 %v162
  %v848 = vunpack.c.l.b16 %v163
  %v849 = vunpack.c.h.b16 %v163
  %v850 = vunpack.c.l.b16 %v164
  %v851 = vunpack.c.h.b16 %v164
  %v852 = vunpack.c.l.b16 %v165
  %v853 = vunpack.c.h.b16 %v165
  %v854 = vunpack.c.l.b16 %v166
  %v855 = vunpack.c.h.b16 %v166
  %v856 = vunpack.c.l.b16 %v167
  %v857 = vunpack.c.h.b16 %v167
  %v858 = vunpack.c.l.b16 %v168
  %v859 = vunpack.c.h.b16 %v168
  %v860 = vunpack.c.l.b16 %v169
  %v861 = vunpack.c.h.b16 %v169
  %v862 = vunpack.c.l.b16 %v170
  %v863 = vunpack.c.h.b16 %v170
  %v864 = vunpack.c.l.b16 %v171
  %v865 = vunpack.c.h.b16 %v171
  %v866 = vunpack.c.l.b16 %v172
  %v867 = vunpack.c.h.b16 %v172
  %v868 = vunpack.c.l.b16 %v173
  %v869 = vunpack.c.h.b16 %v173
  %v870 = vunpack.c.l.b16 %v174
  %v871 = vunpack.c.h.b16 %v174
  %v872 = vunpack.c.l.b16 %v175
  %v873 = vunpack.c.h.b16 %v175
  %v874 = vunpack.c.l.b16 %v176
  %v875 = vunpack.c.h.b16 %v176
  %v876 = vunpack.c.l.b16 %v177
  %v877 = vunpack.c.h.b16 %v177
  %v878 = vunpack.c.l.b16 %v178
  %v879 = vunpack.c.h.b16 %v178
  %v880 = vunpack.c.l.b16 %v179
  %v881 = vunpack.c.h.b16 %v179
  %v882 = vunpack.c.l.b16 %v180
  %v883 = vunpack.c.h.b16 %v180
  %v884 = vunpack.c.l.b16 %v181
  %v885 = vunpack.c.h.b16 %v181
  %v886 = vunpack.c.l.b16 %v182
  %v887 = vunpack.c.h.b16 %v182
  %v888 = vunpack.c.l.b16 %v183
  %v889 = vunpack.c.h.b16 %v183
  %v890 = vunpack.c.l.b16 %v184
  %v891 = vunpack.c.h.b16 %v184
  %v892 = vunpack.c.l.b16 %v185
  %v893 = vunpack.c.h.b16 %v185
  %v894 = vunpack.c.l.b16 %v186
  %v895 = vunpack.c.h.b16 %v186
  %v896 = vunpack.c.l.b16 %v187
  %v897 = vunpack.c.h.b16 %v187
  %v898 = vunpack.c.l.b16 %v188
  %v899 = vunpack.c.h.b16 %v188
  %v900 = vunpack.c.l.b16 %v189
  %v901 = vunpack.c.h.b16 %v189
  %v902 = vunpack.c.l.b16 %v190
  %v903 = vunpack.c.h.b16 %v190
  %v904 = vunpack.c.l.b16 %v191
  %v905 = vunpack.c.h.b16 %v191
  %v906 = vunpack.c.l.b16 %v192
  %v907 = vunpack.c.h.b16 %v192
  %v908 = vunpack.c.l.b16 %v193
  %v909 = vunpack.c.h.b16 %v193
  %v910 = vunpack.c.l.b16 %v194
  %v911 = vunpack.c.h.b16 %v194
  %v912 = vunpack.c.l.b16 %v195
  %v913 = vunpack.c.h.b16 %v195
  %v914 = vunpack.c.l.b16 %v196
  %v915 = vunpack.c.h.b16 %v196
  %v916 = vunpack.c.l.b16 %v197
  %v917 = vunpack.c.h.b16 %v197
  %v918 = vunpack.c.l.b16 %v198
  %v919 = vunpack.c.h.b16 %v198
  %v920 = vunpack.c.l.b16 %v199
  %v921 = vunpack.c.h.b16 %v199
  %v922 = vunpack.c.l.b16 %v200
  %v923 = vunpack.c.h.b16 %v200
  %v924 = vunpack.c.l.b16 %v201
  %v925 = vunpack.c.h.b16 %v201
  %v926 = vunpack.c.l.b16 %v202
  %v927 = vunpack.c.h.b16 %v202
  %v928 = vunpack.c.l.b16 %v203
  %v929 = vunpack.c.h.b16 %v203
  %v930 = vunpack.c.l.b16 %v204
  %v931 = vunpack.c.h.b16 %v204
  %v932 = vunpack.c.l.b16 %v205
  %v933 = vunpack.c.h.b16 %v205
  %v934 = vunpack.c.l.b16 %v206
  %v935 = vunpack.c.h.b16 %v206
  %v936 = vunpack.c.l.b16 %v207
  %v937 = vunpack.c.h.b16 %v207
  %v938 = vunpack.c.l.b16 %v208
  %v939 = vunpack.c.h.b16 %v208
  %v940 = vunpack.c.l.b16 %v209
  %v941 = vunpack.c.h.b16 %v209
  %v942 = vunpack.c.l.b16 %v210
  %v943 = vunpack.c.h.b16 %v210
  %v944 = vunpack.c.l.b16 %v211
  %v945 = vunpack.c.h.b16 %v211
  %v946 = vunpack.c.l.b16 %v212
  %v947 = vunpack.c.h.b16 %v212
  %v948 = vunpack.c.l.b16 %v213
  %v949 = vunpack.c.h.b16 %v213
  %v950 = vunpack.c.l.b16 %v214
  %v951 = vunpack.c.h.b16 %v214
  %v952 = vunpack.c.l.b16 %v215
  %v953 = vunpack.c.h.b16 %v215
  %v954 = vunpack.c.l.b16 %v216
  %v955 = vunpack.c.h.b16 %v216
  %v956 = vunpack.c.l.b16 %v217
  %v957 = vunpack.c.h.b16 %v217
  %v958 = vunpack.c.l.b16 %v218
  %v959 = vunpack.c.h.b16 %v218
  %v960 = vunpack.c.l.b16 %v219
  %v961 = vunpack.c.h.b16 %v219
  %v962 = vunpack.c.l.b16 %v220
  %v963 = vunpack.c.h.b16 %v220
  %v964 = vunpack.c.l.b16 %v221
  %v965 = vunpack.c.h.b16 %v221
  %v966 = vunpack.c.l.b16 %v222
  %v967 = vunpack.c.h.b16 %v222
  %v968 = vunpack.c.l.b16 %v223
  %v969 = vunpack.c.h.b16 %v223
  %v970 = vunpack.c.l.b16 %v224
  %v971 = vunpack.c.h.b16 %v224
  %v972 = vunpack.c.l.b16 %v225
  %v973 = vunpack.c.h.b16 %v225
  %v974 = vunpack.c.l.b16 %v226
  %v975 = vunpack.c.h.b16 %v226
  %v976 = vunpack.c.l.b16 %v227
  %v977 = vunpack.c.h.b16 %v227
  %v978 = vunpack.c.l.b16 %v228
  %v979 = vunpack.c.h.b16 %v228
  %v980 = vunpack.c.l.b16 %v229
  %v981 = vunpack.c.h.b16 %v229
  %v982 = vunpack.c.l.b16 %v230
  %v983 = vunpack.c.h.b16 %v230
  %v984 = vunpack.c.l.b16 %v231
  %v985 = vunpack.c.h.b16 %v231
  %v986 = vunpack.c.l.b16 %v232
  %v987 = vunpack.c.h.b16 %v232
  %v988 = vunpack.c.l.b16 %v233
  %v989 = vunpack.c.h.b16 %v233
  %v990 = vunpack.c.l.b16 %v234
  %v991 = vunpack.c.h.b16 %v234
  %v992 = vunpack.c.l.b16 %v235
  %v993 = vunpack.c.h.b16 %v235
  %v994 = vunpack.c.l.b16 %v236
  %v995 = vunpack.c.h.b16 %v236
  %v996 = vunpack.c.l.b16 %v237
  %v997 = vunpack.c.h.b16 %v237
  %v998 = vunpack.c.l.b16 %v238
  %v999 = vunpack.c.h.b16 %v238
  %v1000 = vunpack.c.l.b16 %v239
  %v1001 = vunpack.c.h.b16 %v239
  %v1002 = vunpack.c.l.b16 %v240
  %v1003 = vunpack.c.h.b16 %v240
  %v1004 = vunpack.c.l.b16 %v241
  %v1005 = vunpack.c.h.b16 %v241
  %v1006 = vunpack.c.l.b16 %v242
  %v1007 = vunpack.c.h.b16 %v242
  %v1008 = vunpack.c.l.b16 %v243
  %v1009 = vunpack.c.h.b16 %v243
  %v1010 = vpack.c.b16 %v694, %v690
  %v1011 = vpack.c.b16 %v695, %v691
  %v1012 = vpack.c.b16 %v696, %v692
  %v1013 = vpack.c.b16 %v697, %v693
  %v1014 = vpack.c.b16 %v702, %v698
  %v1015 = vpack.c.b16 %v703, %v699
  %v1016 = vpack.c.b16 %v704, %v700
  %v1017 = vpack.c.b16 %v705, %v701
  %v1018 = vpack.c.b16 %v710, %v706
  %v1019 = vpack.c.b16 %v711, %v707
  %v1020 = vpack.c.b16 %v712, %v708
  %v1021 = vpack.c.b16 %v713, %v709
  %v1022 = vpack.c.b16 %v718, %v714
  %v1023 = vpack.c.b16 %v719, %v715
  %v1024 = vpack.c.b16 %v720, %v716
  %v1025 = vpack.c.b16 %v721, %v717
  %v1026 = vpack.c.b16 %v726, %v722
  %v1027 = vpack.c.b16 %v727, %v723
  %v1028 = vpack.c.b16 %v728, %v724
  %v1029 = vpack.c.b16 %v729, %v725
  %v1030 = vpack.c.b16 %v734, %v730
  %v1031 = vpack.c.b16 %v735, %v731
  %v1032 = vpack.c.b16 %v736, %v732
  %v1033 = vpack.c.b16 %v737, %v733
  %v1034 = vpack.c.b16 %v742, %v738
  %v1035 = vpack.c.b16 %v743, %v739
  %v1036 = vpack.c.b16 %v744, %v740
  %v1037 = vpack.c.b16 %v745, %v741
  %v1038 = vpack.c.b16 %v750, %v746
  %v1039 = vpack.c.b16 %v751, %v747
  %v1040 = vpack.c.b16 %v752, %v748
  %v1041 = vpack.c.b16 %v753, %v749
  %v1042 = vpack.c.b16 %v758, %v754
  %v1043 = vpack.c.b16 %v759, %v755
  %v1044 = vpack.c.b16 %v760, %v756
  %v1045 = vpack.c.b16 %v761, %v757
  %v1046 = vpack.c.b16 %v766, %v762
  %v1047 = vpack.c.b16 %v767, %v763
  %v1048 = vpack.c.b16 %v768, %v764
  %v1049 = vpack.c.b16 %v769, %v765
  %v1050 = vpack.c.b16 %v774, %v770
  %v1051 = vpack.c.b16 %v775, %v771
  %v1052 = vpack.c.b16 %v776, %v772
  %v1053 = vpack.c.b16 %v777, %v773
  %v1054 = vpack.c.b16 %v782, %v778
  %v1055 = vpack.c.b16 %v783, %v779
  %v1056 = vpack.c.b16 %v784, %v780
  %v1057 = vpack.c.b16 %v785, %v781
  %v1058 = vpack.c.b16 %v790, %v786
  %v1059 = vpack.c.b16 %v791, %v787
  %v1060 = vpack.c.b16 %v792, %v788
  %v1061 = vpack.c.b16 %v793, %v789
  %v1062 = vpack.c.b16 %v798, %v794
  %v1063 = vpack.c.b16 %v799, %v795
  %v1064 = vpack.c.b16 %v800, %v796
  %v1065 = vpack.c.b16 %v801, %v797
  %v1066 = vpack.c.b16 %v806, %v802
  %v1067 = vpack.c.b16 %v807, %v803
  %v1068 = vpack.c.b16 %v808, %v804
  %v1069 = vpack.c.b16 %v809, %v805
  %v1070 = vpack.c.b16 %v814, %v810
  %v1071 = vpack.c.b16 %v815, %v811
  %v1072 = vpack.c.b16 %v816, %v812
  %v1073 = vpack.c.b16 %v817, %v813
  %v1074 = vpack.c.b16 %v822, %v818
  %v1075 = vpack.c.b16 %v823, %v819
  %v1076 = vpack.c.b16 %v824, %v820
  %v1077 = vpack.c.b16 %v825, %v821
  %v1078 = vpack.c.b16 %v830, %v826
  %v1079 = vpack.c.b16 %v831, %v827
  %v1080 = vpack.c.b16 %v832, %v828
  %v1081 = vpack.c.b16 %v833, %v829
  %v1082 = vpack.c.b16 %v838, %v834
  %v1083 = vpack.c.b16 %v839, %v835
  %v1084 = vpack.c.b16 %v840, %v836
  %v1085 = vpack.c.b16 %v841, %v837
  %v1086 = vpack.c.b16 %v846, %v842
  %v1087 = vpack.c.b16 %v847, %v843
  %v1088 = vpack.c.b16 %v848, %v844
  %v1089 = vpack.c.b16 %v849, %v845
  %v1090 = vpack.c.b16 %v854, %v850
  %v1091 = vpack.c.b16 %v855, %v851
  %v1092 = vpack.c.b16 %v856, %v852
  %v1093 = vpack.c.b16 %v857, %v853
  %v1094 = vpack.c.b16 %v862, %v858
  %v1095 = vpack.c.b16 %v863, %v859
  %v1096 = vpack.c.b16 %v864, %v860
  %v1097 = vpack.c.b16 %v865, %v861
  %v1098 = vpack.c.b16 %v870, %v866
  %v1099 = vpack.c.b16 %v871, %v867
  %v1100 = vpack.c.b16 %v872, %v868
  %v1101 = vpack.c.b16 %v873, %v869
  %v1102 = vpack.c.b16 %v878, %v874
  %v1103 = vpack.c.b16 %v879, %v875
  %v1104 = vpack.c.b16 %v880, %v876
  %v1105 = vpack.c.b16 %v881, %v877
  %v1106 = vpack.c.b16 %v886, %v882
  %v1107 = vpack.c.b16 %v887, %v883
  %v1108 = vpack.c.b16 %v888, %v884
  %v1109 = vpack.c.b16 %v889, %v885
  %v1110 = vpack.c.b16 %v894, %v890
  %v1111 = vpack.c.b16 %v895, %v891
  %v1112 = vpack.c.b16 %v896, %v892
  %v1113 = vpack.c.b16 %v897, %v893
  %v1114 = vpack.c.b16 %v902, %v898
  %v1115 = vpack.c.b16 %v903, %v899
  %v1116 = vpack.c.b16 %v904, %v900
  %v1117 = vpack.c.b16 %v905, %v901
  %v1118 = vpack.c.b16 %v910, %v906
  %v1119 = vpack.c.b16 %v911, %v907
  %v1120 = vpack.c.b16 %v912, %v908
  %v1121 = vpack.c.b16 %v913, %v909
  %v1122 = vpack.c.b16 %v918, %v914
  %v1123 = vpack.c.b16 %v919, %v915
  %v1124 = vpack.c.b16 %v920, %v916
  %v1125 = vpack.c.b16 %v921, %v917
  %v1126 = vpack.c.b16 %v926, %v922
  %v1127 = vpack.c.b16 %v927, %v923
  %v1128 = vpack.c.b16 %v928, %v924
  %v1129 = vpack.c.b16 %v929, %v925
  %v1130 = vpack.c.b16 %v934, %v930
  %v1131 = vpack.c.b16 %v935, %v931
  %v1132 = vpack.c.b16 %v936, %v932
  %v1133 = vpack.c.b16 %v937, %v933
  %v1134 = vpack.c.b16 %v942, %v938
  %v1135 = vpack.c.b16 %v943, %v939
  %v1136 = vpack.c.b16 %v944, %v940
  %v1137 = vpack.c.b16 %v945, %v941
  %v1138 = vpack.c.b16 %v950, %v946
  %v1139 = vpack.c.b16 %v951, %v947
  %v1140 = vpack.c.b16 %v952, %v948
  %v1141 = vpack.c.b16 %v953, %v949
  %v1142 = vpack.c.b16 %v958, %v954
  %v1143 = vpack.c.b16 %v959, %v955
  %v1144 = vpack.c.b16 %v960, %v956
  %v1145 = vpack.c.b16 %v961, %v957
  %v1146 = vpack.c.b16 %v966, %v962
  %v1147 = vpack.c.b16 %v967, %v963
  %v1148 = vpack.c.b16 %v968, %v964
  %v1149 = vpack.c.b16 %v969, %v965
  %v1150 = vpack.c.b16 %v974, %v970
  %v1151 = vpack.c.b16 %v975, %v971
  %v1152 = vpack.c.b16 %v976, %v972
  %v1153 = vpack.c.b16 %v977, %v973
  %v1154 = vpack.c.b16 %v982, %v978
  %v1155 = vpack.c.b16 %v983, %v979
  %v1156 = vpack.c.b16 %v984, %v980
  %v1157 = vpack.c.b16 %v985, %v981
  %v1158 = vpack.c.b16 %v990, %v986
  %v1159 = vpack.c.b16 %v991, %v987
  %v1160 = vpack.c.b16 %v992, %v988
  %v1161 = vpack.c.b16 %v993, %v989
  %v1162 = vpack.c.b16 %v998, %v994
  %v1163 = vpack.c.b16 %v999, %v995
  %v1164 = vpack.c.b16 %v1000, %v996
  %v1165 = vpack.c.b16 %v1001, %v997
  %v1166 = vpack.c.b16 %v1006, %v1002
  %v1167 = vpack.c.b16 %v1007, %v1003
  %v1168 = vpack.c.b16 %v1008, %v1004
  %v1169 = vpack.c.b16 %v1009, %v1005
  %1330 = vmatprep.subr.bf16.mxu0 %v1039
  %1331 = vmatpush1.bf16.msra.mxu0 %v1038
  %1332 = vmatprep.subr.bf16.mxu0 %v1035
  %1333 = vmatpush1.bf16.msra.mxu0 %v1034
  %1334 = vmatprep.subr.bf16.mxu0 %v1031
  %1335 = vmatpush1.bf16.msra.mxu0 %v1030
  %1336 = vmatprep.subr.bf16.mxu0 %v1027
  %1337 = vmatpush1.bf16.msra.mxu0 %v1026
  %1338 = vmatprep.subr.bf16.mxu0 %v1023
  %1339 = vmatpush1.bf16.msra.mxu0 %v1022
  %1340 = vmatprep.subr.bf16.mxu0 %v1019
  %1341 = vmatpush1.bf16.msra.mxu0 %v1018
  %1342 = vmatprep.subr.bf16.mxu0 %v1015
  %1343 = vmatpush1.bf16.msra.mxu0 %v1014
  %1344 = vmatprep.subr.bf16.mxu0 %v1011
  %1345 = vmatpush1.bf16.msra.mxu0 %v1010
  %1346 = vmatprep.subr.bf16.mxu0 %v1071
  %1347 = vmatpush2.bf16.msra.mxu0 %v1070
  %1348 = vmatprep.subr.bf16.mxu0 %v1067
  %1349 = vmatpush2.bf16.msra.mxu0 %v1066
  %1350 = vmatprep.subr.bf16.mxu0 %v1063
  %1351 = vmatpush2.bf16.msra.mxu0 %v1062
  %1352 = vmatprep.subr.bf16.mxu0 %v1059
  %1353 = vmatpush2.bf16.msra.mxu0 %v1058
  %1354 = vmatprep.subr.bf16.mxu0 %v1055
  %1355 = vmatpush2.bf16.msra.mxu0 %v1054
  %1356 = vmatprep.subr.bf16.mxu0 %v1051
  %1357 = vmatpush2.bf16.msra.mxu0 %v1050
  %1358 = vmatprep.subr.bf16.mxu0 %v1047
  %1359 = vmatpush2.bf16.msra.mxu0 %v1046
  %1360 = vmatprep.subr.bf16.mxu0 %v1043
  %1361 = vmatpush2.bf16.msra.mxu0 %v1042
  %1362 = vmatprep.mubr.bf16.mxu0 %v421
  %1363 = vmatmul.mubr.bf16.gmra.mxu0 %v420
  %v1364 = vpop.f32.mrf.mxu0
  %v1365 = vadd.f32 0.0, %v1364
  %v1366 = vpop.f32.mrf.mxu0
  %v1367 = vadd.f32 0.0, %v1366
  %v1368 = vpop.f32.mrf.mxu0
  %v1369 = vadd.f32 0.0, %v1368
  %v1370 = vpop.f32.mrf.mxu0
  %v1371 = vadd.f32 0.0, %v1370
  %1372 = vmatprep.mubr.bf16.mxu0 %v426
  %1373 = vmatmul.mubr.bf16.gmra.mxu0 %v425
  %v1374 = vpop.f32.mrf.mxu0
  %v1375 = vadd.f32 0.0, %v1374
  %v1376 = vpop.f32.mrf.mxu0
  %v1377 = vadd.f32 0.0, %v1376
  %v1378 = vpop.f32.mrf.mxu0
  %v1379 = vadd.f32 0.0, %v1378
  %v1380 = vpop.f32.mrf.mxu0
  %v1381 = vadd.f32 0.0, %v1380
  %1382 = vmatprep.mubr.bf16.mxu0 %v431
  %1383 = vmatmul.mubr.bf16.gmra.mxu0 %v430
  %v1384 = vpop.f32.mrf.mxu0
  %v1385 = vadd.f32 0.0, %v1384
  %v1386 = vpop.f32.mrf.mxu0
  %v1387 = vadd.f32 0.0, %v1386
  %v1388 = vpop.f32.mrf.mxu0
  %v1389 = vadd.f32 0.0, %v1388
  %v1390 = vpop.f32.mrf.mxu0
  %v1391 = vadd.f32 0.0, %v1390
  %1392 = vmatprep.mubr.bf16.mxu0 %v436
  %1393 = vmatmul.mubr.bf16.gmra.mxu0 %v435
  %v1394 = vpop.f32.mrf.mxu0
  %v1395 = vadd.f32 0.0, %v1394
  %v1396 = vpop.f32.mrf.mxu0
  %v1397 = vadd.f32 0.0, %v1396
  %v1398 = vpop.f32.mrf.mxu0
  %v1399 = vadd.f32 0.0, %v1398
  %v1400 = vpop.f32.mrf.mxu0
  %v1401 = vadd.f32 0.0, %v1400
  %1402 = vmatprep.mubr.bf16.mxu0 %v441
  %1403 = vmatmul.mubr.bf16.gmra.mxu0 %v440
  %v1404 = vpop.f32.mrf.mxu0
  %v1405 = vadd.f32 0.0, %v1404
  %v1406 = vpop.f32.mrf.mxu0
  %v1407 = vadd.f32 0.0, %v1406
  %v1408 = vpop.f32.mrf.mxu0
  %v1409 = vadd.f32 0.0, %v1408
  %v1410 = vpop.f32.mrf.mxu0
  %v1411 = vadd.f32 0.0, %v1410
  %1412 = vmatprep.mubr.bf16.mxu0 %v446
  %1413 = vmatmul.mubr.bf16.gmra.mxu0 %v445
  %v1414 = vpop.f32.mrf.mxu0
  %v1415 = vadd.f32 0.0, %v1414
  %v1416 = vpop.f32.mrf.mxu0
  %v1417 = vadd.f32 0.0, %v1416
  %v1418 = vpop.f32.mrf.mxu0
  %v1419 = vadd.f32 0.0, %v1418
  %v1420 = vpop.f32.mrf.mxu0
  %v1421 = vadd.f32 0.0, %v1420
  %1422 = vmatprep.mubr.bf16.mxu0 %v451
  %1423 = vmatmul.mubr.bf16.gmra.mxu0 %v450
  %v1424 = vpop.f32.mrf.mxu0
  %v1425 = vadd.f32 0.0, %v1424
  %v1426 = vpop.f32.mrf.mxu0
  %v1427 = vadd.f32 0.0, %v1426
  %v1428 = vpop.f32.mrf.mxu0
  %v1429 = vadd.f32 0.0, %v1428
  %v1430 = vpop.f32.mrf.mxu0
  %v1431 = vadd.f32 0.0, %v1430
  %1432 = vmatprep.mubr.bf16.mxu0 %v456
  %1433 = vmatmul.mubr.bf16.gmra.mxu0 %v455
  %v1434 = vpop.f32.mrf.mxu0
  %v1435 = vadd.f32 0.0, %v1434
  %v1436 = vpop.f32.mrf.mxu0
  %v1437 = vadd.f32 0.0, %v1436
  %v1438 = vpop.f32.mrf.mxu0
  %v1439 = vadd.f32 0.0, %v1438
  %v1440 = vpop.f32.mrf.mxu0
  %v1441 = vadd.f32 0.0, %v1440
  %1442 = vmatprep.mubr.bf16.mxu0 %v461
  %1443 = vmatmul.mubr.bf16.gmra.mxu0 %v460
  %v1444 = vpop.f32.mrf.mxu0
  %v1445 = vadd.f32 0.0, %v1444
  %v1446 = vpop.f32.mrf.mxu0
  %v1447 = vadd.f32 0.0, %v1446
  %v1448 = vpop.f32.mrf.mxu0
  %v1449 = vadd.f32 0.0, %v1448
  %v1450 = vpop.f32.mrf.mxu0
  %v1451 = vadd.f32 0.0, %v1450
  %1452 = vmatprep.mubr.bf16.mxu0 %v466
  %1453 = vmatmul.mubr.bf16.gmra.mxu0 %v465
  %v1454 = vpop.f32.mrf.mxu0
  %v1455 = vadd.f32 0.0, %v1454
  %v1456 = vpop.f32.mrf.mxu0
  %v1457 = vadd.f32 0.0, %v1456
  %v1458 = vpop.f32.mrf.mxu0
  %v1459 = vadd.f32 0.0, %v1458
  %v1460 = vpop.f32.mrf.mxu0
  %v1461 = vadd.f32 0.0, %v1460
  %1462 = vmatprep.mubr.bf16.mxu0 %v471
  %1463 = vmatmul.mubr.bf16.gmra.mxu0 %v470
  %v1464 = vpop.f32.mrf.mxu0
  %v1465 = vadd.f32 0.0, %v1464
  %v1466 = vpop.f32.mrf.mxu0
  %v1467 = vadd.f32 0.0, %v1466
  %v1468 = vpop.f32.mrf.mxu0
  %v1469 = vadd.f32 0.0, %v1468
  %v1470 = vpop.f32.mrf.mxu0
  %v1471 = vadd.f32 0.0, %v1470
  %1472 = vdwg.mxu0
  %1473 = vmatprep.subr.bf16.mxu0 %v1103
  %1474 = vmatpush1.bf16.msra.mxu0 %v1102
  %1475 = vmatprep.subr.bf16.mxu0 %v1099
  %1476 = vmatpush1.bf16.msra.mxu0 %v1098
  %1477 = vmatprep.subr.bf16.mxu0 %v1095
  %1478 = vmatpush1.bf16.msra.mxu0 %v1094
  %1479 = vmatprep.subr.bf16.mxu0 %v1091
  %1480 = vmatpush1.bf16.msra.mxu0 %v1090
  %1481 = vmatprep.subr.bf16.mxu0 %v1087
  %1482 = vmatpush1.bf16.msra.mxu0 %v1086
  %1483 = vmatprep.subr.bf16.mxu0 %v1083
  %1484 = vmatpush1.bf16.msra.mxu0 %v1082
  %1485 = vmatprep.subr.bf16.mxu0 %v1079
  %1486 = vmatpush1.bf16.msra.mxu0 %v1078
  %1487 = vmatprep.subr.bf16.mxu0 %v1075
  %1488 = vmatpush1.bf16.msra.mxu0 %v1074
  %1489 = vmatprep.subr.bf16.mxu0 %v1135
  %1490 = vmatpush2.bf16.msra.mxu0 %v1134
  %1491 = vmatprep.subr.bf16.mxu0 %v1131
  %1492 = vmatpush2.bf16.msra.mxu0 %v1130
  %1493 = vmatprep.subr.bf16.mxu0 %v1127
  %1494 = vmatpush2.bf16.msra.mxu0 %v1126
  %1495 = vmatprep.subr.bf16.mxu0 %v1123
  %1496 = vmatpush2.bf16.msra.mxu0 %v1122
  %1497 = vmatprep.subr.bf16.mxu0 %v1119
  %1498 = vmatpush2.bf16.msra.mxu0 %v1118
  %1499 = vmatprep.subr.bf16.mxu0 %v1115
  %1500 = vmatpush2.bf16.msra.mxu0 %v1114
  %1501 = vmatprep.subr.bf16.mxu0 %v1111
  %1502 = vmatpush2.bf16.msra.mxu0 %v1110
  %1503 = vmatprep.subr.bf16.mxu0 %v1107
  %1504 = vmatpush2.bf16.msra.mxu0 %v1106
  %1505 = vmatprep.mubr.bf16.mxu0 %v423
  %1506 = vmatmul.mubr.bf16.gmra.mxu0 %v422
  %v1507 = vpop.f32.mrf.mxu0
  %v1508 = vadd.f32 %v1365, %v1507
  %v1509 = vpop.f32.mrf.mxu0
  %v1510 = vadd.f32 %v1367, %v1509
  %v1511 = vpop.f32.mrf.mxu0
  %v1512 = vadd.f32 %v1369, %v1511
  %v1513 = vpop.f32.mrf.mxu0
  %v1514 = vadd.f32 %v1371, %v1513
  %1515 = vmatprep.mubr.bf16.mxu0 %v428
  %1516 = vmatmul.mubr.bf16.gmra.mxu0 %v427
  %v1517 = vpop.f32.mrf.mxu0
  %v1518 = vadd.f32 %v1375, %v1517
  %v1519 = vpop.f32.mrf.mxu0
  %v1520 = vadd.f32 %v1377, %v1519
  %v1521 = vpop.f32.mrf.mxu0
  %v1522 = vadd.f32 %v1379, %v1521
  %v1523 = vpop.f32.mrf.mxu0
  %v1524 = vadd.f32 %v1381, %v1523
  %1525 = vmatprep.mubr.bf16.mxu0 %v433
  %1526 = vmatmul.mubr.bf16.gmra.mxu0 %v432
  %v1527 = vpop.f32.mrf.mxu0
  %v1528 = vadd.f32 %v1385, %v1527
  %v1529 = vpop.f32.mrf.mxu0
  %v1530 = vadd.f32 %v1387, %v1529
  %v1531 = vpop.f32.mrf.mxu0
  %v1532 = vadd.f32 %v1389, %v1531
  %v1533 = vpop.f32.mrf.mxu0
  %v1534 = vadd.f32 %v1391, %v1533
  %1535 = vmatprep.mubr.bf16.mxu0 %v438
  %1536 = vmatmul.mubr.bf16.gmra.mxu0 %v437
  %v1537 = vpop.f32.mrf.mxu0
  %v1538 = vadd.f32 %v1395, %v1537
  %v1539 = vpop.f32.mrf.mxu0
  %v1540 = vadd.f32 %v1397, %v1539
  %v1541 = vpop.f32.mrf.mxu0
  %v1542 = vadd.f32 %v1399, %v1541
  %v1543 = vpop.f32.mrf.mxu0
  %v1544 = vadd.f32 %v1401, %v1543
  %1545 = vmatprep.mubr.bf16.mxu0 %v443
  %1546 = vmatmul.mubr.bf16.gmra.mxu0 %v442
  %v1547 = vpop.f32.mrf.mxu0
  %v1548 = vadd.f32 %v1405, %v1547
  %v1549 = vpop.f32.mrf.mxu0
  %v1550 = vadd.f32 %v1407, %v1549
  %v1551 = vpop.f32.mrf.mxu0
  %v1552 = vadd.f32 %v1409, %v1551
  %v1553 = vpop.f32.mrf.mxu0
  %v1554 = vadd.f32 %v1411, %v1553
  %1555 = vmatprep.mubr.bf16.mxu0 %v448
  %1556 = vmatmul.mubr.bf16.gmra.mxu0 %v447
  %v1557 = vpop.f32.mrf.mxu0
  %v1558 = vadd.f32 %v1415, %v1557
  %v1559 = vpop.f32.mrf.mxu0
  %v1560 = vadd.f32 %v1417, %v1559
  %v1561 = vpop.f32.mrf.mxu0
  %v1562 = vadd.f32 %v1419, %v1561
  %v1563 = vpop.f32.mrf.mxu0
  %v1564 = vadd.f32 %v1421, %v1563
  %1565 = vmatprep.mubr.bf16.mxu0 %v453
  %1566 = vmatmul.mubr.bf16.gmra.mxu0 %v452
  %v1567 = vpop.f32.mrf.mxu0
  %v1568 = vadd.f32 %v1425, %v1567
  %v1569 = vpop.f32.mrf.mxu0
  %v1570 = vadd.f32 %v1427, %v1569
  %v1571 = vpop.f32.mrf.mxu0
  %v1572 = vadd.f32 %v1429, %v1571
  %v1573 = vpop.f32.mrf.mxu0
  %v1574 = vadd.f32 %v1431, %v1573
  %1575 = vmatprep.mubr.bf16.mxu0 %v458
  %1576 = vmatmul.mubr.bf16.gmra.mxu0 %v457
  %v1577 = vpop.f32.mrf.mxu0
  %v1578 = vadd.f32 %v1435, %v1577
  %v1579 = vpop.f32.mrf.mxu0
  %v1580 = vadd.f32 %v1437, %v1579
  %v1581 = vpop.f32.mrf.mxu0
  %v1582 = vadd.f32 %v1439, %v1581
  %v1583 = vpop.f32.mrf.mxu0
  %v1584 = vadd.f32 %v1441, %v1583
  %1585 = vmatprep.mubr.bf16.mxu0 %v463
  %1586 = vmatmul.mubr.bf16.gmra.mxu0 %v462
  %v1587 = vpop.f32.mrf.mxu0
  %v1588 = vadd.f32 %v1445, %v1587
  %v1589 = vpop.f32.mrf.mxu0
  %v1590 = vadd.f32 %v1447, %v1589
  %v1591 = vpop.f32.mrf.mxu0
  %v1592 = vadd.f32 %v1449, %v1591
  %v1593 = vpop.f32.mrf.mxu0
  %v1594 = vadd.f32 %v1451, %v1593
  %1595 = vmatprep.mubr.bf16.mxu0 %v468
  %1596 = vmatmul.mubr.bf16.gmra.mxu0 %v467
  %v1597 = vpop.f32.mrf.mxu0
  %v1598 = vadd.f32 %v1455, %v1597
  %v1599 = vpop.f32.mrf.mxu0
  %v1600 = vadd.f32 %v1457, %v1599
  %v1601 = vpop.f32.mrf.mxu0
  %v1602 = vadd.f32 %v1459, %v1601
  %v1603 = vpop.f32.mrf.mxu0
  %v1604 = vadd.f32 %v1461, %v1603
  %1605 = vmatprep.mubr.bf16.mxu0 %v473
  %1606 = vmatmul.mubr.bf16.gmra.mxu0 %v472
  %v1607 = vpop.f32.mrf.mxu0
  %v1608 = vadd.f32 %v1465, %v1607
  %v1609 = vpop.f32.mrf.mxu0
  %v1610 = vadd.f32 %v1467, %v1609
  %v1611 = vpop.f32.mrf.mxu0
  %v1612 = vadd.f32 %v1469, %v1611
  %v1613 = vpop.f32.mrf.mxu0
  %v1614 = vadd.f32 %v1471, %v1613
  %1615 = vdwg.mxu0
  %1616 = vmatprep.subr.bf16.mxu0 %v1167
  %1617 = vmatpush1.bf16.msra.mxu0 %v1166
  %1618 = vmatprep.subr.bf16.mxu0 %v1163
  %1619 = vmatpush1.bf16.msra.mxu0 %v1162
  %1620 = vmatprep.subr.bf16.mxu0 %v1159
  %1621 = vmatpush1.bf16.msra.mxu0 %v1158
  %1622 = vmatprep.subr.bf16.mxu0 %v1155
  %1623 = vmatpush1.bf16.msra.mxu0 %v1154
  %1624 = vmatprep.subr.bf16.mxu0 %v1151
  %1625 = vmatpush1.bf16.msra.mxu0 %v1150
  %1626 = vmatprep.subr.bf16.mxu0 %v1147
  %1627 = vmatpush1.bf16.msra.mxu0 %v1146
  %1628 = vmatprep.subr.bf16.mxu0 %v1143
  %1629 = vmatpush1.bf16.msra.mxu0 %v1142
  %1630 = vmatprep.subr.bf16.mxu0 %v1139
  %1631 = vmatpush1.bf16.msra.mxu0 %v1138
  %1632 = vmatprep.subr.bf16.mxu0 0
  %1633 = vmatpush2.bf16.msra.mxu0 0
  %1634 = vmatprep.subr.bf16.mxu0 0
  %1635 = vmatpush2.bf16.msra.mxu0 0
  %1636 = vmatprep.subr.bf16.mxu0 0
  %1637 = vmatpush2.bf16.msra.mxu0 0
  %1638 = vmatprep.subr.bf16.mxu0 0
  %1639 = vmatpush2.bf16.msra.mxu0 0
  %1640 = vmatprep.subr.bf16.mxu0 0
  %1641 = vmatpush2.bf16.msra.mxu0 0
  %1642 = vmatprep.subr.bf16.mxu0 0
  %1643 = vmatpush2.bf16.msra.mxu0 0
  %1644 = vmatprep.subr.bf16.mxu0 0
  %1645 = vmatpush2.bf16.msra.mxu0 0
  %1646 = vmatprep.subr.bf16.mxu0 0
  %1647 = vmatpush2.bf16.msra.mxu0 0
  %1648 = vmatprep.mubr.bf16.mxu0 0
  %1649 = vmatmul.mubr.bf16.gmra.mxu0 %v424
  %v1650 = vpop.f32.mrf.mxu0
  %v1651 = vadd.f32 %v1508, %v1650
  %v1652 = vpop.f32.mrf.mxu0
  %v1653 = vadd.f32 %v1510, %v1652
  %v1654 = vpop.f32.mrf.mxu0
  %v1655 = vadd.f32 %v1512, %v1654
  %v1656 = vpop.f32.mrf.mxu0
  %v1657 = vadd.f32 %v1514, %v1656
  %1658 = vmatprep.mubr.bf16.mxu0 0
  %1659 = vmatmul.mubr.bf16.gmra.mxu0 %v429
  %v1660 = vpop.f32.mrf.mxu0
  %v1661 = vadd.f32 %v1518, %v1660
  %v1662 = vpop.f32.mrf.mxu0
  %v1663 = vadd.f32 %v1520, %v1662
  %v1664 = vpop.f32.mrf.mxu0
  %v1665 = vadd.f32 %v1522, %v1664
  %v1666 = vpop.f32.mrf.mxu0
  %v1667 = vadd.f32 %v1524, %v1666
  %1668 = vmatprep.mubr.bf16.mxu0 0
  %1669 = vmatmul.mubr.bf16.gmra.mxu0 %v434
  %v1670 = vpop.f32.mrf.mxu0
  %v1671 = vadd.f32 %v1528, %v1670
  %v1672 = vpop.f32.mrf.mxu0
  %v1673 = vadd.f32 %v1530, %v1672
  %v1674 = vpop.f32.mrf.mxu0
  %v1675 = vadd.f32 %v1532, %v1674
  %v1676 = vpop.f32.mrf.mxu0
  %v1677 = vadd.f32 %v1534, %v1676
  %1678 = vmatprep.mubr.bf16.mxu0 0
  %1679 = vmatmul.mubr.bf16.gmra.mxu0 %v439
  %v1680 = vpop.f32.mrf.mxu0
  %v1681 = vadd.f32 %v1538, %v1680
  %v1682 = vpop.f32.mrf.mxu0
  %v1683 = vadd.f32 %v1540, %v1682
  %v1684 = vpop.f32.mrf.mxu0
  %v1685 = vadd.f32 %v1542, %v1684
  %v1686 = vpop.f32.mrf.mxu0
  %v1687 = vadd.f32 %v1544, %v1686
  %1688 = vmatprep.mubr.bf16.mxu0 0
  %1689 = vmatmul.mubr.bf16.gmra.mxu0 %v444
  %v1690 = vpop.f32.mrf.mxu0
  %v1691 = vadd.f32 %v1548, %v1690
  %v1692 = vpop.f32.mrf.mxu0
  %v1693 = vadd.f32 %v1550, %v1692
  %v1694 = vpop.f32.mrf.mxu0
  %v1695 = vadd.f32 %v1552, %v1694
  %v1696 = vpop.f32.mrf.mxu0
  %v1697 = vadd.f32 %v1554, %v1696
  %1698 = vmatprep.mubr.bf16.mxu0 0
  %1699 = vmatmul.mubr.bf16.gmra.mxu0 %v449
  %v1700 = vpop.f32.mrf.mxu0
  %v1701 = vadd.f32 %v1558, %v1700
  %v1702 = vpop.f32.mrf.mxu0
  %v1703 = vadd.f32 %v1560, %v1702
  %v1704 = vpop.f32.mrf.mxu0
  %v1705 = vadd.f32 %v1562, %v1704
  %v1706 = vpop.f32.mrf.mxu0
  %v1707 = vadd.f32 %v1564, %v1706
  %1708 = vmatprep.mubr.bf16.mxu0 0
  %1709 = vmatmul.mubr.bf16.gmra.mxu0 %v454
  %v1710 = vpop.f32.mrf.mxu0
  %v1711 = vadd.f32 %v1568, %v1710
  %v1712 = vpop.f32.mrf.mxu0
  %v1713 = vadd.f32 %v1570, %v1712
  %v1714 = vpop.f32.mrf.mxu0
  %v1715 = vadd.f32 %v1572, %v1714
  %v1716 = vpop.f32.mrf.mxu0
  %v1717 = vadd.f32 %v1574, %v1716
  %1718 = vmatprep.mubr.bf16.mxu0 0
  %1719 = vmatmul.mubr.bf16.gmra.mxu0 %v459
  %v1720 = vpop.f32.mrf.mxu0
  %v1721 = vadd.f32 %v1578, %v1720
  %v1722 = vpop.f32.mrf.mxu0
  %v1723 = vadd.f32 %v1580, %v1722
  %v1724 = vpop.f32.mrf.mxu0
  %v1725 = vadd.f32 %v1582, %v1724
  %v1726 = vpop.f32.mrf.mxu0
  %v1727 = vadd.f32 %v1584, %v1726
  %1728 = vmatprep.mubr.bf16.mxu0 0
  %1729 = vmatmul.mubr.bf16.gmra.mxu0 %v464
  %v1730 = vpop.f32.mrf.mxu0
  %v1731 = vadd.f32 %v1588, %v1730
  %v1732 = vpop.f32.mrf.mxu0
  %v1733 = vadd.f32 %v1590, %v1732
  %v1734 = vpop.f32.mrf.mxu0
  %v1735 = vadd.f32 %v1592, %v1734
  %v1736 = vpop.f32.mrf.mxu0
  %v1737 = vadd.f32 %v1594, %v1736
  %1738 = vmatprep.mubr.bf16.mxu0 0
  %1739 = vmatmul.mubr.bf16.gmra.mxu0 %v469
  %v1740 = vpop.f32.mrf.mxu0
  %v1741 = vadd.f32 %v1598, %v1740
  %v1742 = vpop.f32.mrf.mxu0
  %v1743 = vadd.f32 %v1600, %v1742
  %v1744 = vpop.f32.mrf.mxu0
  %v1745 = vadd.f32 %v1602, %v1744
  %v1746 = vpop.f32.mrf.mxu0
  %v1747 = vadd.f32 %v1604, %v1746
  %1748 = vmatprep.mubr.bf16.mxu0 0
  %1749 = vmatmul.mubr.bf16.gmra.mxu0 %v474
  %v1750 = vpop.f32.mrf.mxu0
  %v1751 = vadd.f32 %v1608, %v1750
  %v1752 = vpop.f32.mrf.mxu0
  %v1753 = vadd.f32 %v1610, %v1752
  %v1754 = vpop.f32.mrf.mxu0
  %v1755 = vadd.f32 %v1612, %v1754
  %v1756 = vpop.f32.mrf.mxu0
  %v1757 = vadd.f32 %v1614, %v1756
  %1758 = vdwg.mxu0
  %1759 = vmatprep.subr.bf16.mxu0 %v1041
  %1760 = vmatpush1.bf16.msra.mxu0 %v1040
  %1761 = vmatprep.subr.bf16.mxu0 %v1037
  %1762 = vmatpush1.bf16.msra.mxu0 %v1036
  %1763 = vmatprep.subr.bf16.mxu0 %v1033
  %1764 = vmatpush1.bf16.msra.mxu0 %v1032
  %1765 = vmatprep.subr.bf16.mxu0 %v1029
  %1766 = vmatpush1.bf16.msra.mxu0 %v1028
  %1767 = vmatprep.subr.bf16.mxu0 %v1025
  %1768 = vmatpush1.bf16.msra.mxu0 %v1024
  %1769 = vmatprep.subr.bf16.mxu0 %v1021
  %1770 = vmatpush1.bf16.msra.mxu0 %v1020
  %1771 = vmatprep.subr.bf16.mxu0 %v1017
  %1772 = vmatpush1.bf16.msra.mxu0 %v1016
  %1773 = vmatprep.subr.bf16.mxu0 %v1013
  %1774 = vmatpush1.bf16.msra.mxu0 %v1012
  %1775 = vmatprep.subr.bf16.mxu0 %v1073
  %1776 = vmatpush2.bf16.msra.mxu0 %v1072
  %1777 = vmatprep.subr.bf16.mxu0 %v1069
  %1778 = vmatpush2.bf16.msra.mxu0 %v1068
  %1779 = vmatprep.subr.bf16.mxu0 %v1065
  %1780 = vmatpush2.bf16.msra.mxu0 %v1064
  %1781 = vmatprep.subr.bf16.mxu0 %v1061
  %1782 = vmatpush2.bf16.msra.mxu0 %v1060
  %1783 = vmatprep.subr.bf16.mxu0 %v1057
  %1784 = vmatpush2.bf16.msra.mxu0 %v1056
  %1785 = vmatprep.subr.bf16.mxu0 %v1053
  %1786 = vmatpush2.bf16.msra.mxu0 %v1052
  %1787 = vmatprep.subr.bf16.mxu0 %v1049
  %1788 = vmatpush2.bf16.msra.mxu0 %v1048
  %1789 = vmatprep.subr.bf16.mxu0 %v1045
  %1790 = vmatpush2.bf16.msra.mxu0 %v1044
  %1791 = vmatprep.mubr.bf16.mxu0 %v421
  %1792 = vmatmul.mubr.bf16.gmra.mxu0 %v420
  %v1793 = vpop.f32.mrf.mxu0
  %v1794 = vadd.f32 0.0, %v1793
  %v1795 = vpop.f32.mrf.mxu0
  %v1796 = vadd.f32 0.0, %v1795
  %v1797 = vpop.f32.mrf.mxu0
  %v1798 = vadd.f32 0.0, %v1797
  %v1799 = vpop.f32.mrf.mxu0
  %v1800 = vadd.f32 0.0, %v1799
  %1801 = vmatprep.mubr.bf16.mxu0 %v426
  %1802 = vmatmul.mubr.bf16.gmra.mxu0 %v425
  %v1803 = vpop.f32.mrf.mxu0
  %v1804 = vadd.f32 0.0, %v1803
  %v1805 = vpop.f32.mrf.mxu0
  %v1806 = vadd.f32 0.0, %v1805
  %v1807 = vpop.f32.mrf.mxu0
  %v1808 = vadd.f32 0.0, %v1807
  %v1809 = vpop.f32.mrf.mxu0
  %v1810 = vadd.f32 0.0, %v1809
  %1811 = vmatprep.mubr.bf16.mxu0 %v431
  %1812 = vmatmul.mubr.bf16.gmra.mxu0 %v430
  %v1813 = vpop.f32.mrf.mxu0
  %v1814 = vadd.f32 0.0, %v1813
  %v1815 = vpop.f32.mrf.mxu0
  %v1816 = vadd.f32 0.0, %v1815
  %v1817 = vpop.f32.mrf.mxu0
  %v1818 = vadd.f32 0.0, %v1817
  %v1819 = vpop.f32.mrf.mxu0
  %v1820 = vadd.f32 0.0, %v1819
  %1821 = vmatprep.mubr.bf16.mxu0 %v436
  %1822 = vmatmul.mubr.bf16.gmra.mxu0 %v435
  %v1823 = vpop.f32.mrf.mxu0
  %v1824 = vadd.f32 0.0, %v1823
  %v1825 = vpop.f32.mrf.mxu0
  %v1826 = vadd.f32 0.0, %v1825
  %v1827 = vpop.f32.mrf.mxu0
  %v1828 = vadd.f32 0.0, %v1827
  %v1829 = vpop.f32.mrf.mxu0
  %v1830 = vadd.f32 0.0, %v1829
  %1831 = vmatprep.mubr.bf16.mxu0 %v441
  %1832 = vmatmul.mubr.bf16.gmra.mxu0 %v440
  %v1833 = vpop.f32.mrf.mxu0
  %v1834 = vadd.f32 0.0, %v1833
  %v1835 = vpop.f32.mrf.mxu0
  %v1836 = vadd.f32 0.0, %v1835
  %v1837 = vpop.f32.mrf.mxu0
  %v1838 = vadd.f32 0.0, %v1837
  %v1839 = vpop.f32.mrf.mxu0
  %v1840 = vadd.f32 0.0, %v1839
  %1841 = vmatprep.mubr.bf16.mxu0 %v446
  %1842 = vmatmul.mubr.bf16.gmra.mxu0 %v445
  %v1843 = vpop.f32.mrf.mxu0
  %v1844 = vadd.f32 0.0, %v1843
  %v1845 = vpop.f32.mrf.mxu0
  %v1846 = vadd.f32 0.0, %v1845
  %v1847 = vpop.f32.mrf.mxu0
  %v1848 = vadd.f32 0.0, %v1847
  %v1849 = vpop.f32.mrf.mxu0
  %v1850 = vadd.f32 0.0, %v1849
  %1851 = vmatprep.mubr.bf16.mxu0 %v451
  %1852 = vmatmul.mubr.bf16.gmra.mxu0 %v450
  %v1853 = vpop.f32.mrf.mxu0
  %v1854 = vadd.f32 0.0, %v1853
  %v1855 = vpop.f32.mrf.mxu0
  %v1856 = vadd.f32 0.0, %v1855
  %v1857 = vpop.f32.mrf.mxu0
  %v1858 = vadd.f32 0.0, %v1857
  %v1859 = vpop.f32.mrf.mxu0
  %v1860 = vadd.f32 0.0, %v1859
  %1861 = vmatprep.mubr.bf16.mxu0 %v456
  %1862 = vmatmul.mubr.bf16.gmra.mxu0 %v455
  %v1863 = vpop.f32.mrf.mxu0
  %v1864 = vadd.f32 0.0, %v1863
  %v1865 = vpop.f32.mrf.mxu0
  %v1866 = vadd.f32 0.0, %v1865
  %v1867 = vpop.f32.mrf.mxu0
  %v1868 = vadd.f32 0.0, %v1867
  %v1869 = vpop.f32.mrf.mxu0
  %v1870 = vadd.f32 0.0, %v1869
  %1871 = vmatprep.mubr.bf16.mxu0 %v461
  %1872 = vmatmul.mubr.bf16.gmra.mxu0 %v460
  %v1873 = vpop.f32.mrf.mxu0
  %v1874 = vadd.f32 0.0, %v1873
  %v1875 = vpop.f32.mrf.mxu0
  %v1876 = vadd.f32 0.0, %v1875
  %v1877 = vpop.f32.mrf.mxu0
  %v1878 = vadd.f32 0.0, %v1877
  %v1879 = vpop.f32.mrf.mxu0
  %v1880 = vadd.f32 0.0, %v1879
  %1881 = vmatprep.mubr.bf16.mxu0 %v466
  %1882 = vmatmul.mubr.bf16.gmra.mxu0 %v465
  %v1883 = vpop.f32.mrf.mxu0
  %v1884 = vadd.f32 0.0, %v1883
  %v1885 = vpop.f32.mrf.mxu0
  %v1886 = vadd.f32 0.0, %v1885
  %v1887 = vpop.f32.mrf.mxu0
  %v1888 = vadd.f32 0.0, %v1887
  %v1889 = vpop.f32.mrf.mxu0
  %v1890 = vadd.f32 0.0, %v1889
  %1891 = vmatprep.mubr.bf16.mxu0 %v471
  %1892 = vmatmul.mubr.bf16.gmra.mxu0 %v470
  %v1893 = vpop.f32.mrf.mxu0
  %v1894 = vadd.f32 0.0, %v1893
  %v1895 = vpop.f32.mrf.mxu0
  %v1896 = vadd.f32 0.0, %v1895
  %v1897 = vpop.f32.mrf.mxu0
  %v1898 = vadd.f32 0.0, %v1897
  %v1899 = vpop.f32.mrf.mxu0
  %v1900 = vadd.f32 0.0, %v1899
  %1901 = vdwg.mxu0
  %1902 = vmatprep.subr.bf16.mxu0 %v1105
  %1903 = vmatpush1.bf16.msra.mxu0 %v1104
  %1904 = vmatprep.subr.bf16.mxu0 %v1101
  %1905 = vmatpush1.bf16.msra.mxu0 %v1100
  %1906 = vmatprep.subr.bf16.mxu0 %v1097
  %1907 = vmatpush1.bf16.msra.mxu0 %v1096
  %1908 = vmatprep.subr.bf16.mxu0 %v1093
  %1909 = vmatpush1.bf16.msra.mxu0 %v1092
  %1910 = vmatprep.subr.bf16.mxu0 %v1089
  %1911 = vmatpush1.bf16.msra.mxu0 %v1088
  %1912 = vmatprep.subr.bf16.mxu0 %v1085
  %1913 = vmatpush1.bf16.msra.mxu0 %v1084
  %1914 = vmatprep.subr.bf16.mxu0 %v1081
  %1915 = vmatpush1.bf16.msra.mxu0 %v1080
  %1916 = vmatprep.subr.bf16.mxu0 %v1077
  %1917 = vmatpush1.bf16.msra.mxu0 %v1076
  %1918 = vmatprep.subr.bf16.mxu0 %v1137
  %1919 = vmatpush2.bf16.msra.mxu0 %v1136
  %1920 = vmatprep.subr.bf16.mxu0 %v1133
  %1921 = vmatpush2.bf16.msra.mxu0 %v1132
  %1922 = vmatprep.subr.bf16.mxu0 %v1129
  %1923 = vmatpush2.bf16.msra.mxu0 %v1128
  %1924 = vmatprep.subr.bf16.mxu0 %v1125
  %1925 = vmatpush2.bf16.msra.mxu0 %v1124
  %1926 = vmatprep.subr.bf16.mxu0 %v1121
  %1927 = vmatpush2.bf16.msra.mxu0 %v1120
  %1928 = vmatprep.subr.bf16.mxu0 %v1117
  %1929 = vmatpush2.bf16.msra.mxu0 %v1116
  %1930 = vmatprep.subr.bf16.mxu0 %v1113
  %1931 = vmatpush2.bf16.msra.mxu0 %v1112
  %1932 = vmatprep.subr.bf16.mxu0 %v1109
  %1933 = vmatpush2.bf16.msra.mxu0 %v1108
  %1934 = vmatprep.mubr.bf16.mxu0 %v423
  %1935 = vmatmul.mubr.bf16.gmra.mxu0 %v422
  %v1936 = vpop.f32.mrf.mxu0
  %v1937 = vadd.f32 %v1794, %v1936
  %v1938 = vpop.f32.mrf.mxu0
  %v1939 = vadd.f32 %v1796, %v1938
  %v1940 = vpop.f32.mrf.mxu0
  %v1941 = vadd.f32 %v1798, %v1940
  %v1942 = vpop.f32.mrf.mxu0
  %v1943 = vadd.f32 %v1800, %v1942
  %1944 = vmatprep.mubr.bf16.mxu0 %v428
  %1945 = vmatmul.mubr.bf16.gmra.mxu0 %v427
  %v1946 = vpop.f32.mrf.mxu0
  %v1947 = vadd.f32 %v1804, %v1946
  %v1948 = vpop.f32.mrf.mxu0
  %v1949 = vadd.f32 %v1806, %v1948
  %v1950 = vpop.f32.mrf.mxu0
  %v1951 = vadd.f32 %v1808, %v1950
  %v1952 = vpop.f32.mrf.mxu0
  %v1953 = vadd.f32 %v1810, %v1952
  %1954 = vmatprep.mubr.bf16.mxu0 %v433
  %1955 = vmatmul.mubr.bf16.gmra.mxu0 %v432
  %v1956 = vpop.f32.mrf.mxu0
  %v1957 = vadd.f32 %v1814, %v1956
  %v1958 = vpop.f32.mrf.mxu0
  %v1959 = vadd.f32 %v1816, %v1958
  %v1960 = vpop.f32.mrf.mxu0
  %v1961 = vadd.f32 %v1818, %v1960
  %v1962 = vpop.f32.mrf.mxu0
  %v1963 = vadd.f32 %v1820, %v1962
  %1964 = vmatprep.mubr.bf16.mxu0 %v438
  %1965 = vmatmul.mubr.bf16.gmra.mxu0 %v437
  %v1966 = vpop.f32.mrf.mxu0
  %v1967 = vadd.f32 %v1824, %v1966
  %v1968 = vpop.f32.mrf.mxu0
  %v1969 = vadd.f32 %v1826, %v1968
  %v1970 = vpop.f32.mrf.mxu0
  %v1971 = vadd.f32 %v1828, %v1970
  %v1972 = vpop.f32.mrf.mxu0
  %v1973 = vadd.f32 %v1830, %v1972
  %1974 = vmatprep.mubr.bf16.mxu0 %v443
  %1975 = vmatmul.mubr.bf16.gmra.mxu0 %v442
  %v1976 = vpop.f32.mrf.mxu0
  %v1977 = vadd.f32 %v1834, %v1976
  %v1978 = vpop.f32.mrf.mxu0
  %v1979 = vadd.f32 %v1836, %v1978
  %v1980 = vpop.f32.mrf.mxu0
  %v1981 = vadd.f32 %v1838, %v1980
  %v1982 = vpop.f32.mrf.mxu0
  %v1983 = vadd.f32 %v1840, %v1982
  %1984 = vmatprep.mubr.bf16.mxu0 %v448
  %1985 = vmatmul.mubr.bf16.gmra.mxu0 %v447
  %v1986 = vpop.f32.mrf.mxu0
  %v1987 = vadd.f32 %v1844, %v1986
  %v1988 = vpop.f32.mrf.mxu0
  %v1989 = vadd.f32 %v1846, %v1988
  %v1990 = vpop.f32.mrf.mxu0
  %v1991 = vadd.f32 %v1848, %v1990
  %v1992 = vpop.f32.mrf.mxu0
  %v1993 = vadd.f32 %v1850, %v1992
  %1994 = vmatprep.mubr.bf16.mxu0 %v453
  %1995 = vmatmul.mubr.bf16.gmra.mxu0 %v452
  %v1996 = vpop.f32.mrf.mxu0
  %v1997 = vadd.f32 %v1854, %v1996
  %v1998 = vpop.f32.mrf.mxu0
  %v1999 = vadd.f32 %v1856, %v1998
  %v2000 = vpop.f32.mrf.mxu0
  %v2001 = vadd.f32 %v1858, %v2000
  %v2002 = vpop.f32.mrf.mxu0
  %v2003 = vadd.f32 %v1860, %v2002
  %2004 = vmatprep.mubr.bf16.mxu0 %v458
  %2005 = vmatmul.mubr.bf16.gmra.mxu0 %v457
  %v2006 = vpop.f32.mrf.mxu0
  %v2007 = vadd.f32 %v1864, %v2006
  %v2008 = vpop.f32.mrf.mxu0
  %v2009 = vadd.f32 %v1866, %v2008
  %v2010 = vpop.f32.mrf.mxu0
  %v2011 = vadd.f32 %v1868, %v2010
  %v2012 = vpop.f32.mrf.mxu0
  %v2013 = vadd.f32 %v1870, %v2012
  %2014 = vmatprep.mubr.bf16.mxu0 %v463
  %2015 = vmatmul.mubr.bf16.gmra.mxu0 %v462
  %v2016 = vpop.f32.mrf.mxu0
  %v2017 = vadd.f32 %v1874, %v2016
  %v2018 = vpop.f32.mrf.mxu0
  %v2019 = vadd.f32 %v1876, %v2018
  %v2020 = vpop.f32.mrf.mxu0
  %v2021 = vadd.f32 %v1878, %v2020
  %v2022 = vpop.f32.mrf.mxu0
  %v2023 = vadd.f32 %v1880, %v2022
  %2024 = vmatprep.mubr.bf16.mxu0 %v468
  %2025 = vmatmul.mubr.bf16.gmra.mxu0 %v467
  %v2026 = vpop.f32.mrf.mxu0
  %v2027 = vadd.f32 %v1884, %v2026
  %v2028 = vpop.f32.mrf.mxu0
  %v2029 = vadd.f32 %v1886, %v2028
  %v2030 = vpop.f32.mrf.mxu0
  %v2031 = vadd.f32 %v1888, %v2030
  %v2032 = vpop.f32.mrf.mxu0
  %v2033 = vadd.f32 %v1890, %v2032
  %2034 = vmatprep.mubr.bf16.mxu0 %v473
  %2035 = vmatmul.mubr.bf16.gmra.mxu0 %v472
  %v2036 = vpop.f32.mrf.mxu0
  %v2037 = vadd.f32 %v1894, %v2036
  %v2038 = vpop.f32.mrf.mxu0
  %v2039 = vadd.f32 %v1896, %v2038
  %v2040 = vpop.f32.mrf.mxu0
  %v2041 = vadd.f32 %v1898, %v2040
  %v2042 = vpop.f32.mrf.mxu0
  %v2043 = vadd.f32 %v1900, %v2042
  %2044 = vdwg.mxu0
  %2045 = vmatprep.subr.bf16.mxu0 %v1169
  %2046 = vmatpush1.bf16.msra.mxu0 %v1168
  %2047 = vmatprep.subr.bf16.mxu0 %v1165
  %2048 = vmatpush1.bf16.msra.mxu0 %v1164
  %2049 = vmatprep.subr.bf16.mxu0 %v1161
  %2050 = vmatpush1.bf16.msra.mxu0 %v1160
  %2051 = vmatprep.subr.bf16.mxu0 %v1157
  %2052 = vmatpush1.bf16.msra.mxu0 %v1156
  %2053 = vmatprep.subr.bf16.mxu0 %v1153
  %2054 = vmatpush1.bf16.msra.mxu0 %v1152
  %2055 = vmatprep.subr.bf16.mxu0 %v1149
  %2056 = vmatpush1.bf16.msra.mxu0 %v1148
  %2057 = vmatprep.subr.bf16.mxu0 %v1145
  %2058 = vmatpush1.bf16.msra.mxu0 %v1144
  %2059 = vmatprep.subr.bf16.mxu0 %v1141
  %2060 = vmatpush1.bf16.msra.mxu0 %v1140
  %2061 = vmatprep.subr.bf16.mxu0 0
  %2062 = vmatpush2.bf16.msra.mxu0 0
  %2063 = vmatprep.subr.bf16.mxu0 0
  %2064 = vmatpush2.bf16.msra.mxu0 0
  %2065 = vmatprep.subr.bf16.mxu0 0
  %2066 = vmatpush2.bf16.msra.mxu0 0
  %2067 = vmatprep.subr.bf16.mxu0 0
  %2068 = vmatpush2.bf16.msra.mxu0 0
  %2069 = vmatprep.subr.bf16.mxu0 0
  %2070 = vmatpush2.bf16.msra.mxu0 0
  %2071 = vmatprep.subr.bf16.mxu0 0
  %2072 = vmatpush2.bf16.msra.mxu0 0
  %2073 = vmatprep.subr.bf16.mxu0 0
  %2074 = vmatpush2.bf16.msra.mxu0 0
  %2075 = vmatprep.subr.bf16.mxu0 0
  %2076 = vmatpush2.bf16.msra.mxu0 0
  %2077 = vmatprep.mubr.bf16.mxu0 0
  %2078 = vmatmul.mubr.bf16.gmra.mxu0 %v424
  %v2079 = vpop.f32.mrf.mxu0
  %v2080 = vadd.f32 %v1937, %v2079
  %v2081 = vpop.f32.mrf.mxu0
  %v2082 = vadd.f32 %v1939, %v2081
  %v2083 = vpop.f32.mrf.mxu0
  %v2084 = vadd.f32 %v1941, %v2083
  %v2085 = vpop.f32.mrf.mxu0
  %v2086 = vadd.f32 %v1943, %v2085
  %2087 = vmatprep.mubr.bf16.mxu0 0
  %2088 = vmatmul.mubr.bf16.gmra.mxu0 %v429
  %v2089 = vpop.f32.mrf.mxu0
  %v2090 = vadd.f32 %v1947, %v2089
  %v2091 = vpop.f32.mrf.mxu0
  %v2092 = vadd.f32 %v1949, %v2091
  %v2093 = vpop.f32.mrf.mxu0
  %v2094 = vadd.f32 %v1951, %v2093
  %v2095 = vpop.f32.mrf.mxu0
  %v2096 = vadd.f32 %v1953, %v2095
  %2097 = vmatprep.mubr.bf16.mxu0 0
  %2098 = vmatmul.mubr.bf16.gmra.mxu0 %v434
  %v2099 = vpop.f32.mrf.mxu0
  %v2100 = vadd.f32 %v1957, %v2099
  %v2101 = vpop.f32.mrf.mxu0
  %v2102 = vadd.f32 %v1959, %v2101
  %v2103 = vpop.f32.mrf.mxu0
  %v2104 = vadd.f32 %v1961, %v2103
  %v2105 = vpop.f32.mrf.mxu0
  %v2106 = vadd.f32 %v1963, %v2105
  %2107 = vmatprep.mubr.bf16.mxu0 0
  %2108 = vmatmul.mubr.bf16.gmra.mxu0 %v439
  %v2109 = vpop.f32.mrf.mxu0
  %v2110 = vadd.f32 %v1967, %v2109
  %v2111 = vpop.f32.mrf.mxu0
  %v2112 = vadd.f32 %v1969, %v2111
  %v2113 = vpop.f32.mrf.mxu0
  %v2114 = vadd.f32 %v1971, %v2113
  %v2115 = vpop.f32.mrf.mxu0
  %v2116 = vadd.f32 %v1973, %v2115
  %2117 = vmatprep.mubr.bf16.mxu0 0
  %2118 = vmatmul.mubr.bf16.gmra.mxu0 %v444
  %v2119 = vpop.f32.mrf.mxu0
  %v2120 = vadd.f32 %v1977, %v2119
  %v2121 = vpop.f32.mrf.mxu0
  %v2122 = vadd.f32 %v1979, %v2121
  %v2123 = vpop.f32.mrf.mxu0
  %v2124 = vadd.f32 %v1981, %v2123
  %v2125 = vpop.f32.mrf.mxu0
  %v2126 = vadd.f32 %v1983, %v2125
  %2127 = vmatprep.mubr.bf16.mxu0 0
  %2128 = vmatmul.mubr.bf16.gmra.mxu0 %v449
  %v2129 = vpop.f32.mrf.mxu0
  %v2130 = vadd.f32 %v1987, %v2129
  %v2131 = vpop.f32.mrf.mxu0
  %v2132 = vadd.f32 %v1989, %v2131
  %v2133 = vpop.f32.mrf.mxu0
  %v2134 = vadd.f32 %v1991, %v2133
  %v2135 = vpop.f32.mrf.mxu0
  %v2136 = vadd.f32 %v1993, %v2135
  %2137 = vmatprep.mubr.bf16.mxu0 0
  %2138 = vmatmul.mubr.bf16.gmra.mxu0 %v454
  %v2139 = vpop.f32.mrf.mxu0
  %v2140 = vadd.f32 %v1997, %v2139
  %v2141 = vpop.f32.mrf.mxu0
  %v2142 = vadd.f32 %v1999, %v2141
  %v2143 = vpop.f32.mrf.mxu0
  %v2144 = vadd.f32 %v2001, %v2143
  %v2145 = vpop.f32.mrf.mxu0
  %v2146 = vadd.f32 %v2003, %v2145
  %2147 = vmatprep.mubr.bf16.mxu0 0
  %2148 = vmatmul.mubr.bf16.gmra.mxu0 %v459
  %v2149 = vpop.f32.mrf.mxu0
  %v2150 = vadd.f32 %v2007, %v2149
  %v2151 = vpop.f32.mrf.mxu0
  %v2152 = vadd.f32 %v2009, %v2151
  %v2153 = vpop.f32.mrf.mxu0
  %v2154 = vadd.f32 %v2011, %v2153
  %v2155 = vpop.f32.mrf.mxu0
  %v2156 = vadd.f32 %v2013, %v2155
  %2157 = vmatprep.mubr.bf16.mxu0 0
  %2158 = vmatmul.mubr.bf16.gmra.mxu0 %v464
  %v2159 = vpop.f32.mrf.mxu0
  %v2160 = vadd.f32 %v2017, %v2159
  %v2161 = vpop.f32.mrf.mxu0
  %v2162 = vadd.f32 %v2019, %v2161
  %v2163 = vpop.f32.mrf.mxu0
  %v2164 = vadd.f32 %v2021, %v2163
  %v2165 = vpop.f32.mrf.mxu0
  %v2166 = vadd.f32 %v2023, %v2165
  %2167 = vmatprep.mubr.bf16.mxu0 0
  %2168 = vmatmul.mubr.bf16.gmra.mxu0 %v469
  %v2169 = vpop.f32.mrf.mxu0
  %v2170 = vadd.f32 %v2027, %v2169
  %v2171 = vpop.f32.mrf.mxu0
  %v2172 = vadd.f32 %v2029, %v2171
  %v2173 = vpop.f32.mrf.mxu0
  %v2174 = vadd.f32 %v2031, %v2173
  %v2175 = vpop.f32.mrf.mxu0
  %v2176 = vadd.f32 %v2033, %v2175
  %2177 = vmatprep.mubr.bf16.mxu0 0
  %2178 = vmatmul.mubr.bf16.gmra.mxu0 %v474
  %v2179 = vpop.f32.mrf.mxu0
  %v2180 = vadd.f32 %v2037, %v2179
  %v2181 = vpop.f32.mrf.mxu0
  %v2182 = vadd.f32 %v2039, %v2181
  %v2183 = vpop.f32.mrf.mxu0
  %v2184 = vadd.f32 %v2041, %v2183
  %v2185 = vpop.f32.mrf.mxu0
  %v2186 = vadd.f32 %v2043, %v2185
  %2187 = vdwg.mxu0
  %v2188 = vmax.f32 %v1651, 0.0
  %v2189 = vmax.f32 %v1653, 0.0
  %v2190 = vmax.f32 %v2080, 0.0
  %v2191 = vmax.f32 %v2082, 0.0
  %v2192 = vmax.f32 %v1655, 0.0
  %v2193 = vmax.f32 %v1657, 0.0
  %v2194 = vmax.f32 %v2084, 0.0
  %v2195 = vmax.f32 %v2086, 0.0
  %v2196 = vmax.f32 %v1661, 0.0
  %v2197 = vmax.f32 %v1663, 0.0
  %v2198 = vmax.f32 %v2090, 0.0
  %v2199 = vmax.f32 %v2092, 0.0
  %v2200 = vmax.f32 %v1665, 0.0
  %v2201 = vmax.f32 %v1667, 0.0
  %v2202 = vmax.f32 %v2094, 0.0
  %v2203 = vmax.f32 %v2096, 0.0
  %v2204 = vmax.f32 %v1671, 0.0
  %v2205 = vmax.f32 %v1673, 0.0
  %v2206 = vmax.f32 %v2100, 0.0
  %v2207 = vmax.f32 %v2102, 0.0
  %v2208 = vmax.f32 %v1675, 0.0
  %v2209 = vmax.f32 %v1677, 0.0
  %v2210 = vmax.f32 %v2104, 0.0
  %v2211 = vmax.f32 %v2106, 0.0
  %v2212 = vmax.f32 %v1681, 0.0
  %v2213 = vmax.f32 %v1683, 0.0
  %v2214 = vmax.f32 %v2110, 0.0
  %v2215 = vmax.f32 %v2112, 0.0
  %v2216 = vmax.f32 %v1685, 0.0
  %v2217 = vmax.f32 %v1687, 0.0
  %v2218 = vmax.f32 %v2114, 0.0
  %v2219 = vmax.f32 %v2116, 0.0
  %v2220 = vmax.f32 %v1691, 0.0
  %v2221 = vmax.f32 %v1693, 0.0
  %v2222 = vmax.f32 %v2120, 0.0
  %v2223 = vmax.f32 %v2122, 0.0
  %v2224 = vmax.f32 %v1695, 0.0
  %v2225 = vmax.f32 %v1697, 0.0
  %v2226 = vmax.f32 %v2124, 0.0
  %v2227 = vmax.f32 %v2126, 0.0
  %v2228 = vmax.f32 %v1701, 0.0
  %v2229 = vmax.f32 %v1703, 0.0
  %v2230 = vmax.f32 %v2130, 0.0
  %v2231 = vmax.f32 %v2132, 0.0
  %v2232 = vmax.f32 %v1705, 0.0
  %v2233 = vmax.f32 %v1707, 0.0
  %v2234 = vmax.f32 %v2134, 0.0
  %v2235 = vmax.f32 %v2136, 0.0
  %v2236 = vmax.f32 %v1711, 0.0
  %v2237 = vmax.f32 %v1713, 0.0
  %v2238 = vmax.f32 %v2140, 0.0
  %v2239 = vmax.f32 %v2142, 0.0
  %v2240 = vmax.f32 %v1715, 0.0
  %v2241 = vmax.f32 %v1717, 0.0
  %v2242 = vmax.f32 %v2144, 0.0
  %v2243 = vmax.f32 %v2146, 0.0
  %v2244 = vmax.f32 %v1721, 0.0
  %v2245 = vmax.f32 %v1723, 0.0
  %v2246 = vmax.f32 %v2150, 0.0
  %v2247 = vmax.f32 %v2152, 0.0
  %v2248 = vmax.f32 %v1725, 0.0
  %v2249 = vmax.f32 %v1727, 0.0
  %v2250 = vmax.f32 %v2154, 0.0
  %v2251 = vmax.f32 %v2156, 0.0
  %v2252 = vmax.f32 %v1731, 0.0
  %v2253 = vmax.f32 %v1733, 0.0
  %v2254 = vmax.f32 %v2160, 0.0
  %v2255 = vmax.f32 %v2162, 0.0
  %v2256 = vmax.f32 %v1735, 0.0
  %v2257 = vmax.f32 %v1737, 0.0
  %v2258 = vmax.f32 %v2164, 0.0
  %v2259 = vmax.f32 %v2166, 0.0
  %v2260 = vmax.f32 %v1741, 0.0
  %v2261 = vmax.f32 %v1743, 0.0
  %v2262 = vmax.f32 %v2170, 0.0
  %v2263 = vmax.f32 %v2172, 0.0
  %v2264 = vmax.f32 %v1745, 0.0
  %v2265 = vmax.f32 %v1747, 0.0
  %v2266 = vmax.f32 %v2174, 0.0
  %v2267 = vmax.f32 %v2176, 0.0
  %v2268 = vmax.f32 %v1751, 0.0
  %v2269 = vmax.f32 %v1753, 0.0
  %v2270 = vmax.f32 %v2180, 0.0
  %v2271 = vmax.f32 %v2182, 0.0
  %v2272 = vmax.f32 %v1755, 0.0
  %v2273 = vmax.f32 %v1757, 0.0
  %v2274 = vmax.f32 %v2184, 0.0
  %v2275 = vmax.f32 %v2186, 0.0
  %v2276 = vadd.f32 %v2188, %v2192
  %v2277 = vadd.f32 %v2276, %v2196
  %v2278 = vadd.f32 %v2277, %v2200
  %v2279 = vadd.f32 %v2278, %v2204
  %v2280 = vadd.f32 %v2279, %v2208
  %v2281 = vadd.f32 %v2280, %v2212
  %v2282 = vadd.f32 %v2281, %v2216
  %v2283 = vadd.f32 %v2282, %v2220
  %v2284 = vadd.f32 %v2283, %v2224
  %v2285 = vadd.f32 %v2284, %v2228
  %v2286 = vrot.slane %v2285, 4
  %v2287 = vadd.f32 %v2285, %v2286
  %v2288 = vrot.slane %v2287, 2
  %v2289 = vadd.f32 %v2287, %v2288
  %v2290 = vrot.slane %v2289, 1
  %v2291 = vadd.f32 %v2289, %v2290
  %v2292 = vadd.f32 %v2189, %v2193
  %v2293 = vadd.f32 %v2292, %v2197
  %v2294 = vadd.f32 %v2293, %v2201
  %v2295 = vadd.f32 %v2294, %v2205
  %v2296 = vadd.f32 %v2295, %v2209
  %v2297 = vadd.f32 %v2296, %v2213
  %v2298 = vadd.f32 %v2297, %v2217
  %v2299 = vadd.f32 %v2298, %v2221
  %v2300 = vadd.f32 %v2299, %v2225
  %v2301 = vadd.f32 %v2300, %v2229
  %v2302 = vrot.slane %v2301, 4
  %v2303 = vadd.f32 %v2301, %v2302
  %v2304 = vrot.slane %v2303, 2
  %v2305 = vadd.f32 %v2303, %v2304
  %v2306 = vrot.slane %v2305, 1
  %v2307 = vadd.f32 %v2305, %v2306
  %v2308 = vadd.f32 %v2190, %v2194
  %v2309 = vadd.f32 %v2308, %v2198
  %v2310 = vadd.f32 %v2309, %v2202
  %v2311 = vadd.f32 %v2310, %v2206
  %v2312 = vadd.f32 %v2311, %v2210
  %v2313 = vadd.f32 %v2312, %v2214
  %v2314 = vadd.f32 %v2313, %v2218
  %v2315 = vadd.f32 %v2314, %v2222
  %v2316 = vadd.f32 %v2315, %v2226
  %v2317 = vadd.f32 %v2316, %v2230
  %v2318 = vrot.slane %v2317, 4
  %v2319 = vadd.f32 %v2317, %v2318
  %v2320 = vrot.slane %v2319, 2
  %v2321 = vadd.f32 %v2319, %v2320
  %v2322 = vrot.slane %v2321, 1
  %v2323 = vadd.f32 %v2321, %v2322
  %v2324 = vadd.f32 %v2191, %v2195
  %v2325 = vadd.f32 %v2324, %v2199
  %v2326 = vadd.f32 %v2325, %v2203
  %v2327 = vadd.f32 %v2326, %v2207
  %v2328 = vadd.f32 %v2327, %v2211
  %v2329 = vadd.f32 %v2328, %v2215
  %v2330 = vadd.f32 %v2329, %v2219
  %v2331 = vadd.f32 %v2330, %v2223
  %v2332 = vadd.f32 %v2331, %v2227
  %v2333 = vadd.f32 %v2332, %v2231
  %v2334 = vrot.slane %v2333, 4
  %v2335 = vadd.f32 %v2333, %v2334
  %v2336 = vrot.slane %v2335, 2
  %v2337 = vadd.f32 %v2335, %v2336
  %v2338 = vrot.slane %v2337, 1
  %v2339 = vadd.f32 %v2337, %v2338
  %v2340 = vadd.f32 %v2232, %v2236
  %v2341 = vadd.f32 %v2340, %v2240
  %v2342 = vadd.f32 %v2341, %v2244
  %v2343 = vadd.f32 %v2342, %v2248
  %v2344 = vadd.f32 %v2343, %v2252
  %v2345 = vadd.f32 %v2344, %v2256
  %v2346 = vadd.f32 %v2345, %v2260
  %v2347 = vadd.f32 %v2346, %v2264
  %v2348 = vadd.f32 %v2347, %v2268
  %v2349 = vadd.f32 %v2348, %v2272
  %v2350 = vrot.slane %v2349, 4
  %v2351 = vadd.f32 %v2349, %v2350
  %v2352 = vrot.slane %v2351, 2
  %v2353 = vadd.f32 %v2351, %v2352
  %v2354 = vrot.slane %v2353, 1
  %v2355 = vadd.f32 %v2353, %v2354
  %v2356 = vadd.f32 %v2233, %v2237
  %v2357 = vadd.f32 %v2356, %v2241
  %v2358 = vadd.f32 %v2357, %v2245
  %v2359 = vadd.f32 %v2358, %v2249
  %v2360 = vadd.f32 %v2359, %v2253
  %v2361 = vadd.f32 %v2360, %v2257
  %v2362 = vadd.f32 %v2361, %v2261
  %v2363 = vadd.f32 %v2362, %v2265
  %v2364 = vadd.f32 %v2363, %v2269
  %v2365 = vadd.f32 %v2364, %v2273
  %v2366 = vrot.slane %v2365, 4
  %v2367 = vadd.f32 %v2365, %v2366
  %v2368 = vrot.slane %v2367, 2
  %v2369 = vadd.f32 %v2367, %v2368
  %v2370 = vrot.slane %v2369, 1
  %v2371 = vadd.f32 %v2369, %v2370
  %v2372 = vadd.f32 %v2234, %v2238
  %v2373 = vadd.f32 %v2372, %v2242
  %v2374 = vadd.f32 %v2373, %v2246
  %v2375 = vadd.f32 %v2374, %v2250
  %v2376 = vadd.f32 %v2375, %v2254
  %v2377 = vadd.f32 %v2376, %v2258
  %v2378 = vadd.f32 %v2377, %v2262
  %v2379 = vadd.f32 %v2378, %v2266
  %v2380 = vadd.f32 %v2379, %v2270
  %v2381 = vadd.f32 %v2380, %v2274
  %v2382 = vrot.slane %v2381, 4
  %v2383 = vadd.f32 %v2381, %v2382
  %v2384 = vrot.slane %v2383, 2
  %v2385 = vadd.f32 %v2383, %v2384
  %v2386 = vrot.slane %v2385, 1
  %v2387 = vadd.f32 %v2385, %v2386
  %v2388 = vadd.f32 %v2235, %v2239
  %v2389 = vadd.f32 %v2388, %v2243
  %v2390 = vadd.f32 %v2389, %v2247
  %v2391 = vadd.f32 %v2390, %v2251
  %v2392 = vadd.f32 %v2391, %v2255
  %v2393 = vadd.f32 %v2392, %v2259
  %v2394 = vadd.f32 %v2393, %v2263
  %v2395 = vadd.f32 %v2394, %v2267
  %v2396 = vadd.f32 %v2395, %v2271
  %v2397 = vadd.f32 %v2396, %v2275
  %v2398 = vrot.slane %v2397, 4
  %v2399 = vadd.f32 %v2397, %v2398
  %v2400 = vrot.slane %v2399, 2
  %v2401 = vadd.f32 %v2399, %v2400
  %v2402 = vrot.slane %v2401, 1
  %v2403 = vadd.f32 %v2401, %v2402
  %vm2404 = vcmask 1040384
  %v2405 = vsel %vm2404, %v2291, %v2355
  %v2406 = vsel %vm2404, %v2307, %v2371
  %v2407 = vsel %vm2404, %v2323, %v2387
  %v2408 = vsel %vm2404, %v2339, %v2403
  %v2409 = vmul.f32 %v2405, 0.0008503401
  %v2410 = vmul.f32 %v2406, 0.0008503401
  %v2411 = vmul.f32 %v2407, 0.0008503401
  %v2412 = vmul.f32 %v2408, 0.0008503401
  %v2413 = vpack.c.bf16 %v2409, %v2409
  %v2414 = vpack.c.bf16 %v2410, %v2410
  %v2415 = vpack.c.bf16 %v2411, %v2411
  %v2416 = vpack.c.bf16 %v2412, %v2412
  %v2417 = vld [vmem:[%s2] sm:$0xff]
  %v2418 = vld [vmem:[%s2 + $0x8] sm:$0xff]
  %v2419 = vld [vmem:[%s2 + $0x10] sm:$0xff]
  %v2420 = vld [vmem:[%s2 + $0x18] sm:$0xff]
  %v2421 = vld [vmem:[%s2 + $0x20] sm:$0xff]
  %v2422 = vld [vmem:[%s2 + $0x28] sm:$0xff]
  %v2423 = vld [vmem:[%s2 + $0x30] sm:$0xff]
  %v2424 = vld [vmem:[%s2 + $0x38] sm:$0xff]
  %v2425 = vld [vmem:[%s2 + $0x40] sm:$0xff]
  %v2426 = vld [vmem:[%s2 + $0x48] sm:$0xff]
  %v2427 = vld [vmem:[%s2 + $0x50] sm:$0xff]
  %v2428 = vld [vmem:[%s2 + $0x58] sm:$0xff]
  %v2429 = vld [vmem:[%s2 + $0x60] sm:$0xff]
  %v2430 = vld [vmem:[%s2 + $0x68] sm:$0xff]
  %v2431 = vld [vmem:[%s2 + $0x70] sm:$0xff]
  %v2432 = vld [vmem:[%s2 + $0x78] sm:$0xff]
  %v2433 = vld [vmem:[%s2 + $0x80] sm:$0xff]
  %v2434 = vld [vmem:[%s2 + $0x88] sm:$0xff]
  %v2435 = vld [vmem:[%s2 + $0x90] sm:$0xff]
  %v2436 = vld [vmem:[%s2 + $0x98] sm:$0xff]
  %v2437 = vld [vmem:[%s2 + $0xa0] sm:$0xff]
  %v2438 = vld [vmem:[%s2 + $0xa8] sm:$0xff]
  %v2439 = vld [vmem:[%s2 + $0xb0] sm:$0xff]
  %v2440 = vld [vmem:[%s2 + $0xb8] sm:$0xff]
  %v2441 = vld [vmem:[%s2 + $0xc0] sm:$0xff]
  %v2442 = vld [vmem:[%s2 + $0xc8] sm:$0xff]
  %v2443 = vld [vmem:[%s2 + $0xd0] sm:$0xff]
  %v2444 = vld [vmem:[%s2 + $0xd8] sm:$0xff]
  %v2445 = vld [vmem:[%s2 + $0xe0] sm:$0xff]
  %v2446 = vld [vmem:[%s2 + $0xe8] sm:$0xff]
  %v2447 = vld [vmem:[%s2 + $0xf0] sm:$0xff]
  %v2448 = vld [vmem:[%s2 + $0xf8] sm:$0xff]
  %v2449 = vld [vmem:[%s2 + $0x100] sm:$0xff]
  %v2450 = vld [vmem:[%s2 + $0x108] sm:$0xff]
  %v2451 = vld [vmem:[%s2 + $0x110] sm:$0xff]
  %v2452 = vld [vmem:[%s2 + $0x118] sm:$0xff]
  %v2453 = vld [vmem:[%s2 + $0x120] sm:$0xff]
  %v2454 = vld [vmem:[%s2 + $0x128] sm:$0xff]
  %v2455 = vld [vmem:[%s2 + $0x130] sm:$0xff]
  %v2456 = vld [vmem:[%s2 + $0x138] sm:$0xff]
  %v2457 = vld [vmem:[%s2 + $0x140] sm:$0xff]
  %v2458 = vld [vmem:[%s2 + $0x148] sm:$0xff]
  %v2459 = vld [vmem:[%s2 + $0x150] sm:$0xff]
  %v2460 = vld [vmem:[%s2 + $0x158] sm:$0xff]
  %v2461 = vld [vmem:[%s2 + $0x160] sm:$0xff]
  %v2462 = vld [vmem:[%s2 + $0x168] sm:$0xff]
  %v2463 = vld [vmem:[%s2 + $0x170] sm:$0xff]
  %v2464 = vld [vmem:[%s2 + $0x178] sm:$0xff]
  %v2465 = vld [vmem:[%s2 + $0x180] sm:$0xff]
  %v2466 = vld [vmem:[%s2 + $0x188] sm:$0xff]
  %v2467 = vld [vmem:[%s2 + $0x190] sm:$0xff]
  %v2468 = vld [vmem:[%s2 + $0x198] sm:$0xff]
  %v2469 = vld [vmem:[%s2 + $0x1a0] sm:$0xff]
  %v2470 = vld [vmem:[%s2 + $0x1a8] sm:$0xff]
  %v2471 = vld [vmem:[%s2 + $0x1b0] sm:$0xff]
  %v2472 = vld [vmem:[%s2 + $0x1b8] sm:$0xff]
  %v2473 = vld [vmem:[%s2 + $0x1c0] sm:$0xff]
  %v2474 = vld [vmem:[%s2 + $0x1c8] sm:$0xff]
  %v2475 = vld [vmem:[%s2 + $0x1d0] sm:$0xff]
  %v2476 = vld [vmem:[%s2 + $0x1d8] sm:$0xff]
  %v2477 = vld [vmem:[%s2 + $0x1e0] sm:$0xff]
  %v2478 = vld [vmem:[%s2 + $0x1e8] sm:$0xff]
  %v2479 = vld [vmem:[%s2 + $0x1f0] sm:$0xff]
  %v2480 = vld [vmem:[%s2 + $0x1f8] sm:$0xff]
  %v2481 = vld [vmem:[%s2 + $0x200] sm:$0xff]
  %v2482 = vld [vmem:[%s2 + $0x208] sm:$0xff]
  %v2483 = vld [vmem:[%s2 + $0x210] sm:$0xff]
  %v2484 = vld [vmem:[%s2 + $0x218] sm:$0xff]
  %v2485 = vld [vmem:[%s2 + $0x220] sm:$0xff]
  %v2486 = vld [vmem:[%s2 + $0x228] sm:$0xff]
  %v2487 = vld [vmem:[%s2 + $0x230] sm:$0xff]
  %v2488 = vld [vmem:[%s2 + $0x238] sm:$0xff]
  %v2489 = vld [vmem:[%s2 + $0x240] sm:$0xff]
  %v2490 = vld [vmem:[%s2 + $0x248] sm:$0xff]
  %v2491 = vld [vmem:[%s2 + $0x250] sm:$0xff]
  %v2492 = vld [vmem:[%s2 + $0x258] sm:$0xff]
  %v2493 = vld [vmem:[%s2 + $0x260] sm:$0xff]
  %v2494 = vld [vmem:[%s2 + $0x268] sm:$0xff]
  %v2495 = vld [vmem:[%s2 + $0x270] sm:$0xff]
  %v2496 = vld [vmem:[%s2 + $0x278] sm:$0xff]
  %v2497 = vld [vmem:[%s2 + $0x280] sm:$0xff]
  %v2498 = vld [vmem:[%s2 + $0x288] sm:$0xff]
  %v2499 = vld [vmem:[%s2 + $0x290] sm:$0xff]
  %v2500 = vld [vmem:[%s2 + $0x298] sm:$0xff]
  %v2501 = vld [vmem:[%s2 + $0x2a0] sm:$0xff]
  %v2502 = vld [vmem:[%s2 + $0x2a8] sm:$0xff]
  %v2503 = vld [vmem:[%s2 + $0x2b0] sm:$0xff]
  %v2504 = vld [vmem:[%s2 + $0x2b8] sm:$0xff]
  %v2505 = vld [vmem:[%s2 + $0x2c0] sm:$0xff]
  %v2506 = vld [vmem:[%s2 + $0x2c8] sm:$0xff]
  %v2507 = vld [vmem:[%s2 + $0x2d0] sm:$0xff]
  %v2508 = vld [vmem:[%s2 + $0x2d8] sm:$0xff]
  %v2509 = vld [vmem:[%s2 + $0x2e0] sm:$0xff]
  %v2510 = vld [vmem:[%s2 + $0x2e8] sm:$0xff]
  %v2511 = vld [vmem:[%s2 + $0x2f0] sm:$0xff]
  %v2512 = vld [vmem:[%s2 + $0x2f8] sm:$0xff]
  %v2513 = vld [vmem:[%s2 + $0x300] sm:$0xff]
  %v2514 = vld [vmem:[%s2 + $0x308] sm:$0xff]
  %v2515 = vld [vmem:[%s2 + $0x310] sm:$0xff]
  %v2516 = vld [vmem:[%s2 + $0x318] sm:$0xff]
  %v2517 = vld [vmem:[%s2 + $0x320] sm:$0xff]
  %v2518 = vld [vmem:[%s2 + $0x328] sm:$0xff]
  %v2519 = vld [vmem:[%s2 + $0x330] sm:$0xff]
  %v2520 = vld [vmem:[%s2 + $0x338] sm:$0xff]
  %v2521 = vld [vmem:[%s2 + $0x340] sm:$0xff]
  %v2522 = vld [vmem:[%s2 + $0x348] sm:$0xff]
  %v2523 = vld [vmem:[%s2 + $0x350] sm:$0xff]
  %v2524 = vld [vmem:[%s2 + $0x358] sm:$0xff]
  %v2525 = vld [vmem:[%s2 + $0x360] sm:$0xff]
  %v2526 = vld [vmem:[%s2 + $0x368] sm:$0xff]
  %v2527 = vld [vmem:[%s2 + $0x370] sm:$0xff]
  %v2528 = vld [vmem:[%s2 + $0x378] sm:$0xff]
  %v2529 = vld [vmem:[%s2 + $0x380] sm:$0xff]
  %v2530 = vld [vmem:[%s2 + $0x388] sm:$0xff]
  %v2531 = vld [vmem:[%s2 + $0x390] sm:$0xff]
  %v2532 = vld [vmem:[%s2 + $0x398] sm:$0xff]
  %v2533 = vld [vmem:[%s2 + $0x3a0] sm:$0xff]
  %v2534 = vld [vmem:[%s2 + $0x3a8] sm:$0xff]
  %v2535 = vld [vmem:[%s2 + $0x3b0] sm:$0xff]
  %v2536 = vld [vmem:[%s2 + $0x3b8] sm:$0xff]
  %v2537 = vld [vmem:[%s2 + $0x3c0] sm:$0xff]
  %v2538 = vld [vmem:[%s2 + $0x3c8] sm:$0xff]
  %v2539 = vld [vmem:[%s2 + $0x3d0] sm:$0xff]
  %v2540 = vld [vmem:[%s2 + $0x3d8] sm:$0xff]
  %v2541 = vld [vmem:[%s2 + $0x3e0] sm:$0xff]
  %v2542 = vld [vmem:[%s2 + $0x3e8] sm:$0xff]
  %v2543 = vld [vmem:[%s2 + $0x3f0] sm:$0xff]
  %v2544 = vld [vmem:[%s2 + $0x3f8] sm:$0xff]
  %v2545 = vld [vmem:[%s3] sm:$0xf]
  %v2547 = vlaneseq
  %v2548 = vshrl.u32 %v2547, 7
  %v2549 = vsub.s32 0, %v2548
  %v2550 = vrot.slane %v2545, %v2549
  %v2551 = vlaneseq
  %v2552 = vshrl.u32 %v2551, 7
  %v2553 = vsub.s32 1, %v2552
  %v2554 = vrot.slane %v2545, %v2553
  %v2555 = vlaneseq
  %v2556 = vshrl.u32 %v2555, 7
  %v2557 = vsub.s32 2, %v2556
  %v2558 = vrot.slane %v2545, %v2557
  %v2559 = vlaneseq
  %v2560 = vshrl.u32 %v2559, 7
  %v2561 = vsub.s32 3, %v2560
  %v2562 = vrot.slane %v2545, %v2561
  %v2695 = vunpack.c.l.b16 %v2417
  %v2696 = vunpack.c.h.b16 %v2417
  %v2697 = vunpack.c.l.b16 %v2418
  %v2698 = vunpack.c.h.b16 %v2418
  %v2699 = vunpack.c.l.b16 %v2419
  %v2700 = vunpack.c.h.b16 %v2419
  %v2701 = vunpack.c.l.b16 %v2420
  %v2702 = vunpack.c.h.b16 %v2420
  %v2703 = vunpack.c.l.b16 %v2421
  %v2704 = vunpack.c.h.b16 %v2421
  %v2705 = vunpack.c.l.b16 %v2422
  %v2706 = vunpack.c.h.b16 %v2422
  %v2707 = vunpack.c.l.b16 %v2423
  %v2708 = vunpack.c.h.b16 %v2423
  %v2709 = vunpack.c.l.b16 %v2424
  %v2710 = vunpack.c.h.b16 %v2424
  %v2711 = vunpack.c.l.b16 %v2425
  %v2712 = vunpack.c.h.b16 %v2425
  %v2713 = vunpack.c.l.b16 %v2426
  %v2714 = vunpack.c.h.b16 %v2426
  %v2715 = vunpack.c.l.b16 %v2427
  %v2716 = vunpack.c.h.b16 %v2427
  %v2717 = vunpack.c.l.b16 %v2428
  %v2718 = vunpack.c.h.b16 %v2428
  %v2719 = vunpack.c.l.b16 %v2429
  %v2720 = vunpack.c.h.b16 %v2429
  %v2721 = vunpack.c.l.b16 %v2430
  %v2722 = vunpack.c.h.b16 %v2430
  %v2723 = vunpack.c.l.b16 %v2431
  %v2724 = vunpack.c.h.b16 %v2431
  %v2725 = vunpack.c.l.b16 %v2432
  %v2726 = vunpack.c.h.b16 %v2432
  %v2727 = vunpack.c.l.b16 %v2433
  %v2728 = vunpack.c.h.b16 %v2433
  %v2729 = vunpack.c.l.b16 %v2434
  %v2730 = vunpack.c.h.b16 %v2434
  %v2731 = vunpack.c.l.b16 %v2435
  %v2732 = vunpack.c.h.b16 %v2435
  %v2733 = vunpack.c.l.b16 %v2436
  %v2734 = vunpack.c.h.b16 %v2436
  %v2735 = vunpack.c.l.b16 %v2437
  %v2736 = vunpack.c.h.b16 %v2437
  %v2737 = vunpack.c.l.b16 %v2438
  %v2738 = vunpack.c.h.b16 %v2438
  %v2739 = vunpack.c.l.b16 %v2439
  %v2740 = vunpack.c.h.b16 %v2439
  %v2741 = vunpack.c.l.b16 %v2440
  %v2742 = vunpack.c.h.b16 %v2440
  %v2743 = vunpack.c.l.b16 %v2441
  %v2744 = vunpack.c.h.b16 %v2441
  %v2745 = vunpack.c.l.b16 %v2442
  %v2746 = vunpack.c.h.b16 %v2442
  %v2747 = vunpack.c.l.b16 %v2443
  %v2748 = vunpack.c.h.b16 %v2443
  %v2749 = vunpack.c.l.b16 %v2444
  %v2750 = vunpack.c.h.b16 %v2444
  %v2751 = vunpack.c.l.b16 %v2445
  %v2752 = vunpack.c.h.b16 %v2445
  %v2753 = vunpack.c.l.b16 %v2446
  %v2754 = vunpack.c.h.b16 %v2446
  %v2755 = vunpack.c.l.b16 %v2447
  %v2756 = vunpack.c.h.b16 %v2447
  %v2757 = vunpack.c.l.b16 %v2448
  %v2758 = vunpack.c.h.b16 %v2448
  %v2759 = vunpack.c.l.b16 %v2449
  %v2760 = vunpack.c.h.b16 %v2449
  %v2761 = vunpack.c.l.b16 %v2450
  %v2762 = vunpack.c.h.b16 %v2450
  %v2763 = vunpack.c.l.b16 %v2451
  %v2764 = vunpack.c.h.b16 %v2451
  %v2765 = vunpack.c.l.b16 %v2452
  %v2766 = vunpack.c.h.b16 %v2452
  %v2767 = vunpack.c.l.b16 %v2453
  %v2768 = vunpack.c.h.b16 %v2453
  %v2769 = vunpack.c.l.b16 %v2454
  %v2770 = vunpack.c.h.b16 %v2454
  %v2771 = vunpack.c.l.b16 %v2455
  %v2772 = vunpack.c.h.b16 %v2455
  %v2773 = vunpack.c.l.b16 %v2456
  %v2774 = vunpack.c.h.b16 %v2456
  %v2775 = vunpack.c.l.b16 %v2457
  %v2776 = vunpack.c.h.b16 %v2457
  %v2777 = vunpack.c.l.b16 %v2458
  %v2778 = vunpack.c.h.b16 %v2458
  %v2779 = vunpack.c.l.b16 %v2459
  %v2780 = vunpack.c.h.b16 %v2459
  %v2781 = vunpack.c.l.b16 %v2460
  %v2782 = vunpack.c.h.b16 %v2460
  %v2783 = vunpack.c.l.b16 %v2461
  %v2784 = vunpack.c.h.b16 %v2461
  %v2785 = vunpack.c.l.b16 %v2462
  %v2786 = vunpack.c.h.b16 %v2462
  %v2787 = vunpack.c.l.b16 %v2463
  %v2788 = vunpack.c.h.b16 %v2463
  %v2789 = vunpack.c.l.b16 %v2464
  %v2790 = vunpack.c.h.b16 %v2464
  %v2791 = vunpack.c.l.b16 %v2465
  %v2792 = vunpack.c.h.b16 %v2465
  %v2793 = vunpack.c.l.b16 %v2466
  %v2794 = vunpack.c.h.b16 %v2466
  %v2795 = vunpack.c.l.b16 %v2467
  %v2796 = vunpack.c.h.b16 %v2467
  %v2797 = vunpack.c.l.b16 %v2468
  %v2798 = vunpack.c.h.b16 %v2468
  %v2799 = vunpack.c.l.b16 %v2469
  %v2800 = vunpack.c.h.b16 %v2469
  %v2801 = vunpack.c.l.b16 %v2470
  %v2802 = vunpack.c.h.b16 %v2470
  %v2803 = vunpack.c.l.b16 %v2471
  %v2804 = vunpack.c.h.b16 %v2471
  %v2805 = vunpack.c.l.b16 %v2472
  %v2806 = vunpack.c.h.b16 %v2472
  %v2807 = vunpack.c.l.b16 %v2473
  %v2808 = vunpack.c.h.b16 %v2473
  %v2809 = vunpack.c.l.b16 %v2474
  %v2810 = vunpack.c.h.b16 %v2474
  %v2811 = vunpack.c.l.b16 %v2475
  %v2812 = vunpack.c.h.b16 %v2475
  %v2813 = vunpack.c.l.b16 %v2476
  %v2814 = vunpack.c.h.b16 %v2476
  %v2815 = vunpack.c.l.b16 %v2477
  %v2816 = vunpack.c.h.b16 %v2477
  %v2817 = vunpack.c.l.b16 %v2478
  %v2818 = vunpack.c.h.b16 %v2478
  %v2819 = vunpack.c.l.b16 %v2479
  %v2820 = vunpack.c.h.b16 %v2479
  %v2821 = vunpack.c.l.b16 %v2480
  %v2822 = vunpack.c.h.b16 %v2480
  %v2823 = vunpack.c.l.b16 %v2481
  %v2824 = vunpack.c.h.b16 %v2481
  %v2825 = vunpack.c.l.b16 %v2482
  %v2826 = vunpack.c.h.b16 %v2482
  %v2827 = vunpack.c.l.b16 %v2483
  %v2828 = vunpack.c.h.b16 %v2483
  %v2829 = vunpack.c.l.b16 %v2484
  %v2830 = vunpack.c.h.b16 %v2484
  %v2831 = vunpack.c.l.b16 %v2485
  %v2832 = vunpack.c.h.b16 %v2485
  %v2833 = vunpack.c.l.b16 %v2486
  %v2834 = vunpack.c.h.b16 %v2486
  %v2835 = vunpack.c.l.b16 %v2487
  %v2836 = vunpack.c.h.b16 %v2487
  %v2837 = vunpack.c.l.b16 %v2488
  %v2838 = vunpack.c.h.b16 %v2488
  %v2839 = vunpack.c.l.b16 %v2489
  %v2840 = vunpack.c.h.b16 %v2489
  %v2841 = vunpack.c.l.b16 %v2490
  %v2842 = vunpack.c.h.b16 %v2490
  %v2843 = vunpack.c.l.b16 %v2491
  %v2844 = vunpack.c.h.b16 %v2491
  %v2845 = vunpack.c.l.b16 %v2492
  %v2846 = vunpack.c.h.b16 %v2492
  %v2847 = vunpack.c.l.b16 %v2493
  %v2848 = vunpack.c.h.b16 %v2493
  %v2849 = vunpack.c.l.b16 %v2494
  %v2850 = vunpack.c.h.b16 %v2494
  %v2851 = vunpack.c.l.b16 %v2495
  %v2852 = vunpack.c.h.b16 %v2495
  %v2853 = vunpack.c.l.b16 %v2496
  %v2854 = vunpack.c.h.b16 %v2496
  %v2855 = vunpack.c.l.b16 %v2497
  %v2856 = vunpack.c.h.b16 %v2497
  %v2857 = vunpack.c.l.b16 %v2498
  %v2858 = vunpack.c.h.b16 %v2498
  %v2859 = vunpack.c.l.b16 %v2499
  %v2860 = vunpack.c.h.b16 %v2499
  %v2861 = vunpack.c.l.b16 %v2500
  %v2862 = vunpack.c.h.b16 %v2500
  %v2863 = vunpack.c.l.b16 %v2501
  %v2864 = vunpack.c.h.b16 %v2501
  %v2865 = vunpack.c.l.b16 %v2502
  %v2866 = vunpack.c.h.b16 %v2502
  %v2867 = vunpack.c.l.b16 %v2503
  %v2868 = vunpack.c.h.b16 %v2503
  %v2869 = vunpack.c.l.b16 %v2504
  %v2870 = vunpack.c.h.b16 %v2504
  %v2871 = vunpack.c.l.b16 %v2505
  %v2872 = vunpack.c.h.b16 %v2505
  %v2873 = vunpack.c.l.b16 %v2506
  %v2874 = vunpack.c.h.b16 %v2506
  %v2875 = vunpack.c.l.b16 %v2507
  %v2876 = vunpack.c.h.b16 %v2507
  %v2877 = vunpack.c.l.b16 %v2508
  %v2878 = vunpack.c.h.b16 %v2508
  %v2879 = vunpack.c.l.b16 %v2509
  %v2880 = vunpack.c.h.b16 %v2509
  %v2881 = vunpack.c.l.b16 %v2510
  %v2882 = vunpack.c.h.b16 %v2510
  %v2883 = vunpack.c.l.b16 %v2511
  %v2884 = vunpack.c.h.b16 %v2511
  %v2885 = vunpack.c.l.b16 %v2512
  %v2886 = vunpack.c.h.b16 %v2512
  %v2887 = vunpack.c.l.b16 %v2513
  %v2888 = vunpack.c.h.b16 %v2513
  %v2889 = vunpack.c.l.b16 %v2514
  %v2890 = vunpack.c.h.b16 %v2514
  %v2891 = vunpack.c.l.b16 %v2515
  %v2892 = vunpack.c.h.b16 %v2515
  %v2893 = vunpack.c.l.b16 %v2516
  %v2894 = vunpack.c.h.b16 %v2516
  %v2895 = vunpack.c.l.b16 %v2517
  %v2896 = vunpack.c.h.b16 %v2517
  %v2897 = vunpack.c.l.b16 %v2518
  %v2898 = vunpack.c.h.b16 %v2518
  %v2899 = vunpack.c.l.b16 %v2519
  %v2900 = vunpack.c.h.b16 %v2519
  %v2901 = vunpack.c.l.b16 %v2520
  %v2902 = vunpack.c.h.b16 %v2520
  %v2903 = vunpack.c.l.b16 %v2521
  %v2904 = vunpack.c.h.b16 %v2521
  %v2905 = vunpack.c.l.b16 %v2522
  %v2906 = vunpack.c.h.b16 %v2522
  %v2907 = vunpack.c.l.b16 %v2523
  %v2908 = vunpack.c.h.b16 %v2523
  %v2909 = vunpack.c.l.b16 %v2524
  %v2910 = vunpack.c.h.b16 %v2524
  %v2911 = vunpack.c.l.b16 %v2525
  %v2912 = vunpack.c.h.b16 %v2525
  %v2913 = vunpack.c.l.b16 %v2526
  %v2914 = vunpack.c.h.b16 %v2526
  %v2915 = vunpack.c.l.b16 %v2527
  %v2916 = vunpack.c.h.b16 %v2527
  %v2917 = vunpack.c.l.b16 %v2528
  %v2918 = vunpack.c.h.b16 %v2528
  %v2919 = vunpack.c.l.b16 %v2529
  %v2920 = vunpack.c.h.b16 %v2529
  %v2921 = vunpack.c.l.b16 %v2530
  %v2922 = vunpack.c.h.b16 %v2530
  %v2923 = vunpack.c.l.b16 %v2531
  %v2924 = vunpack.c.h.b16 %v2531
  %v2925 = vunpack.c.l.b16 %v2532
  %v2926 = vunpack.c.h.b16 %v2532
  %v2927 = vunpack.c.l.b16 %v2533
  %v2928 = vunpack.c.h.b16 %v2533
  %v2929 = vunpack.c.l.b16 %v2534
  %v2930 = vunpack.c.h.b16 %v2534
  %v2931 = vunpack.c.l.b16 %v2535
  %v2932 = vunpack.c.h.b16 %v2535
  %v2933 = vunpack.c.l.b16 %v2536
  %v2934 = vunpack.c.h.b16 %v2536
  %v2935 = vunpack.c.l.b16 %v2537
  %v2936 = vunpack.c.h.b16 %v2537
  %v2937 = vunpack.c.l.b16 %v2538
  %v2938 = vunpack.c.h.b16 %v2538
  %v2939 = vunpack.c.l.b16 %v2539
  %v2940 = vunpack.c.h.b16 %v2539
  %v2941 = vunpack.c.l.b16 %v2540
  %v2942 = vunpack.c.h.b16 %v2540
  %v2943 = vunpack.c.l.b16 %v2541
  %v2944 = vunpack.c.h.b16 %v2541
  %v2945 = vunpack.c.l.b16 %v2542
  %v2946 = vunpack.c.h.b16 %v2542
  %v2947 = vunpack.c.l.b16 %v2543
  %v2948 = vunpack.c.h.b16 %v2543
  %v2949 = vunpack.c.l.b16 %v2544
  %v2950 = vunpack.c.h.b16 %v2544
  %v2951 = vpack.c.b16 %v2699, %v2695
  %v2952 = vpack.c.b16 %v2700, %v2696
  %v2953 = vpack.c.b16 %v2701, %v2697
  %v2954 = vpack.c.b16 %v2702, %v2698
  %v2955 = vpack.c.b16 %v2707, %v2703
  %v2956 = vpack.c.b16 %v2708, %v2704
  %v2957 = vpack.c.b16 %v2709, %v2705
  %v2958 = vpack.c.b16 %v2710, %v2706
  %v2959 = vpack.c.b16 %v2715, %v2711
  %v2960 = vpack.c.b16 %v2716, %v2712
  %v2961 = vpack.c.b16 %v2717, %v2713
  %v2962 = vpack.c.b16 %v2718, %v2714
  %v2963 = vpack.c.b16 %v2723, %v2719
  %v2964 = vpack.c.b16 %v2724, %v2720
  %v2965 = vpack.c.b16 %v2725, %v2721
  %v2966 = vpack.c.b16 %v2726, %v2722
  %v2967 = vpack.c.b16 %v2731, %v2727
  %v2968 = vpack.c.b16 %v2732, %v2728
  %v2969 = vpack.c.b16 %v2733, %v2729
  %v2970 = vpack.c.b16 %v2734, %v2730
  %v2971 = vpack.c.b16 %v2739, %v2735
  %v2972 = vpack.c.b16 %v2740, %v2736
  %v2973 = vpack.c.b16 %v2741, %v2737
  %v2974 = vpack.c.b16 %v2742, %v2738
  %v2975 = vpack.c.b16 %v2747, %v2743
  %v2976 = vpack.c.b16 %v2748, %v2744
  %v2977 = vpack.c.b16 %v2749, %v2745
  %v2978 = vpack.c.b16 %v2750, %v2746
  %v2979 = vpack.c.b16 %v2755, %v2751
  %v2980 = vpack.c.b16 %v2756, %v2752
  %v2981 = vpack.c.b16 %v2757, %v2753
  %v2982 = vpack.c.b16 %v2758, %v2754
  %v2983 = vpack.c.b16 %v2763, %v2759
  %v2984 = vpack.c.b16 %v2764, %v2760
  %v2985 = vpack.c.b16 %v2765, %v2761
  %v2986 = vpack.c.b16 %v2766, %v2762
  %v2987 = vpack.c.b16 %v2771, %v2767
  %v2988 = vpack.c.b16 %v2772, %v2768
  %v2989 = vpack.c.b16 %v2773, %v2769
  %v2990 = vpack.c.b16 %v2774, %v2770
  %v2991 = vpack.c.b16 %v2779, %v2775
  %v2992 = vpack.c.b16 %v2780, %v2776
  %v2993 = vpack.c.b16 %v2781, %v2777
  %v2994 = vpack.c.b16 %v2782, %v2778
  %v2995 = vpack.c.b16 %v2787, %v2783
  %v2996 = vpack.c.b16 %v2788, %v2784
  %v2997 = vpack.c.b16 %v2789, %v2785
  %v2998 = vpack.c.b16 %v2790, %v2786
  %v2999 = vpack.c.b16 %v2795, %v2791
  %v3000 = vpack.c.b16 %v2796, %v2792
  %v3001 = vpack.c.b16 %v2797, %v2793
  %v3002 = vpack.c.b16 %v2798, %v2794
  %v3003 = vpack.c.b16 %v2803, %v2799
  %v3004 = vpack.c.b16 %v2804, %v2800
  %v3005 = vpack.c.b16 %v2805, %v2801
  %v3006 = vpack.c.b16 %v2806, %v2802
  %v3007 = vpack.c.b16 %v2811, %v2807
  %v3008 = vpack.c.b16 %v2812, %v2808
  %v3009 = vpack.c.b16 %v2813, %v2809
  %v3010 = vpack.c.b16 %v2814, %v2810
  %v3011 = vpack.c.b16 %v2819, %v2815
  %v3012 = vpack.c.b16 %v2820, %v2816
  %v3013 = vpack.c.b16 %v2821, %v2817
  %v3014 = vpack.c.b16 %v2822, %v2818
  %v3015 = vpack.c.b16 %v2827, %v2823
  %v3016 = vpack.c.b16 %v2828, %v2824
  %v3017 = vpack.c.b16 %v2829, %v2825
  %v3018 = vpack.c.b16 %v2830, %v2826
  %v3019 = vpack.c.b16 %v2835, %v2831
  %v3020 = vpack.c.b16 %v2836, %v2832
  %v3021 = vpack.c.b16 %v2837, %v2833
  %v3022 = vpack.c.b16 %v2838, %v2834
  %v3023 = vpack.c.b16 %v2843, %v2839
  %v3024 = vpack.c.b16 %v2844, %v2840
  %v3025 = vpack.c.b16 %v2845, %v2841
  %v3026 = vpack.c.b16 %v2846, %v2842
  %v3027 = vpack.c.b16 %v2851, %v2847
  %v3028 = vpack.c.b16 %v2852, %v2848
  %v3029 = vpack.c.b16 %v2853, %v2849
  %v3030 = vpack.c.b16 %v2854, %v2850
  %v3031 = vpack.c.b16 %v2859, %v2855
  %v3032 = vpack.c.b16 %v2860, %v2856
  %v3033 = vpack.c.b16 %v2861, %v2857
  %v3034 = vpack.c.b16 %v2862, %v2858
  %v3035 = vpack.c.b16 %v2867, %v2863
  %v3036 = vpack.c.b16 %v2868, %v2864
  %v3037 = vpack.c.b16 %v2869, %v2865
  %v3038 = vpack.c.b16 %v2870, %v2866
  %v3039 = vpack.c.b16 %v2875, %v2871
  %v3040 = vpack.c.b16 %v2876, %v2872
  %v3041 = vpack.c.b16 %v2877, %v2873
  %v3042 = vpack.c.b16 %v2878, %v2874
  %v3043 = vpack.c.b16 %v2883, %v2879
  %v3044 = vpack.c.b16 %v2884, %v2880
  %v3045 = vpack.c.b16 %v2885, %v2881
  %v3046 = vpack.c.b16 %v2886, %v2882
  %v3047 = vpack.c.b16 %v2891, %v2887
  %v3048 = vpack.c.b16 %v2892, %v2888
  %v3049 = vpack.c.b16 %v2893, %v2889
  %v3050 = vpack.c.b16 %v2894, %v2890
  %v3051 = vpack.c.b16 %v2899, %v2895
  %v3052 = vpack.c.b16 %v2900, %v2896
  %v3053 = vpack.c.b16 %v2901, %v2897
  %v3054 = vpack.c.b16 %v2902, %v2898
  %v3055 = vpack.c.b16 %v2907, %v2903
  %v3056 = vpack.c.b16 %v2908, %v2904
  %v3057 = vpack.c.b16 %v2909, %v2905
  %v3058 = vpack.c.b16 %v2910, %v2906
  %v3059 = vpack.c.b16 %v2915, %v2911
  %v3060 = vpack.c.b16 %v2916, %v2912
  %v3061 = vpack.c.b16 %v2917, %v2913
  %v3062 = vpack.c.b16 %v2918, %v2914
  %v3063 = vpack.c.b16 %v2923, %v2919
  %v3064 = vpack.c.b16 %v2924, %v2920
  %v3065 = vpack.c.b16 %v2925, %v2921
  %v3066 = vpack.c.b16 %v2926, %v2922
  %v3067 = vpack.c.b16 %v2931, %v2927
  %v3068 = vpack.c.b16 %v2932, %v2928
  %v3069 = vpack.c.b16 %v2933, %v2929
  %v3070 = vpack.c.b16 %v2934, %v2930
  %v3071 = vpack.c.b16 %v2939, %v2935
  %v3072 = vpack.c.b16 %v2940, %v2936
  %v3073 = vpack.c.b16 %v2941, %v2937
  %v3074 = vpack.c.b16 %v2942, %v2938
  %v3075 = vpack.c.b16 %v2947, %v2943
  %v3076 = vpack.c.b16 %v2948, %v2944
  %v3077 = vpack.c.b16 %v2949, %v2945
  %v3078 = vpack.c.b16 %v2950, %v2946
  %3207 = vmatprep.subr.bf16.mxu0 %v2980
  %3208 = vmatpush1.bf16.msra.mxu0 %v2979
  %3209 = vmatprep.subr.bf16.mxu0 %v2976
  %3210 = vmatpush1.bf16.msra.mxu0 %v2975
  %3211 = vmatprep.subr.bf16.mxu0 %v2972
  %3212 = vmatpush1.bf16.msra.mxu0 %v2971
  %3213 = vmatprep.subr.bf16.mxu0 %v2968
  %3214 = vmatpush1.bf16.msra.mxu0 %v2967
  %3215 = vmatprep.subr.bf16.mxu0 %v2964
  %3216 = vmatpush1.bf16.msra.mxu0 %v2963
  %3217 = vmatprep.subr.bf16.mxu0 %v2960
  %3218 = vmatpush1.bf16.msra.mxu0 %v2959
  %3219 = vmatprep.subr.bf16.mxu0 %v2956
  %3220 = vmatpush1.bf16.msra.mxu0 %v2955
  %3221 = vmatprep.subr.bf16.mxu0 %v2952
  %3222 = vmatpush1.bf16.msra.mxu0 %v2951
  %3223 = vmatprep.subr.bf16.mxu0 %v3012
  %3224 = vmatpush2.bf16.msra.mxu0 %v3011
  %3225 = vmatprep.subr.bf16.mxu0 %v3008
  %3226 = vmatpush2.bf16.msra.mxu0 %v3007
  %3227 = vmatprep.subr.bf16.mxu0 %v3004
  %3228 = vmatpush2.bf16.msra.mxu0 %v3003
  %3229 = vmatprep.subr.bf16.mxu0 %v3000
  %3230 = vmatpush2.bf16.msra.mxu0 %v2999
  %3231 = vmatprep.subr.bf16.mxu0 %v2996
  %3232 = vmatpush2.bf16.msra.mxu0 %v2995
  %3233 = vmatprep.subr.bf16.mxu0 %v2992
  %3234 = vmatpush2.bf16.msra.mxu0 %v2991
  %3235 = vmatprep.subr.bf16.mxu0 %v2988
  %3236 = vmatpush2.bf16.msra.mxu0 %v2987
  %3237 = vmatprep.subr.bf16.mxu0 %v2984
  %3238 = vmatpush2.bf16.msra.mxu0 %v2983
  %3239 = vmatprep.mubr.bf16.mxu0 %v2414
  %3240 = vmatmul.mubr.bf16.gmra.mxu0 %v2413
  %v3241 = vpop.f32.mrf.mxu0
  %v3242 = vadd.f32 %v2550, %v3241
  %v3243 = vpop.f32.mrf.mxu0
  %v3244 = vadd.f32 %v2554, %v3243
  %v3245 = vpop.f32.mrf.mxu0
  %v3246 = vpop.f32.mrf.mxu0
  %3247 = vdwg.mxu0
  %3248 = vmatprep.subr.bf16.mxu0 %v3044
  %3249 = vmatpush1.bf16.msra.mxu0 %v3043
  %3250 = vmatprep.subr.bf16.mxu0 %v3040
  %3251 = vmatpush1.bf16.msra.mxu0 %v3039
  %3252 = vmatprep.subr.bf16.mxu0 %v3036
  %3253 = vmatpush1.bf16.msra.mxu0 %v3035
  %3254 = vmatprep.subr.bf16.mxu0 %v3032
  %3255 = vmatpush1.bf16.msra.mxu0 %v3031
  %3256 = vmatprep.subr.bf16.mxu0 %v3028
  %3257 = vmatpush1.bf16.msra.mxu0 %v3027
  %3258 = vmatprep.subr.bf16.mxu0 %v3024
  %3259 = vmatpush1.bf16.msra.mxu0 %v3023
  %3260 = vmatprep.subr.bf16.mxu0 %v3020
  %3261 = vmatpush1.bf16.msra.mxu0 %v3019
  %3262 = vmatprep.subr.bf16.mxu0 %v3016
  %3263 = vmatpush1.bf16.msra.mxu0 %v3015
  %3264 = vmatprep.subr.bf16.mxu0 %v3076
  %3265 = vmatpush2.bf16.msra.mxu0 %v3075
  %3266 = vmatprep.subr.bf16.mxu0 %v3072
  %3267 = vmatpush2.bf16.msra.mxu0 %v3071
  %3268 = vmatprep.subr.bf16.mxu0 %v3068
  %3269 = vmatpush2.bf16.msra.mxu0 %v3067
  %3270 = vmatprep.subr.bf16.mxu0 %v3064
  %3271 = vmatpush2.bf16.msra.mxu0 %v3063
  %3272 = vmatprep.subr.bf16.mxu0 %v3060
  %3273 = vmatpush2.bf16.msra.mxu0 %v3059
  %3274 = vmatprep.subr.bf16.mxu0 %v3056
  %3275 = vmatpush2.bf16.msra.mxu0 %v3055
  %3276 = vmatprep.subr.bf16.mxu0 %v3052
  %3277 = vmatpush2.bf16.msra.mxu0 %v3051
  %3278 = vmatprep.subr.bf16.mxu0 %v3048
  %3279 = vmatpush2.bf16.msra.mxu0 %v3047
  %3280 = vmatprep.mubr.bf16.mxu0 %v2416
  %3281 = vmatmul.mubr.bf16.gmra.mxu0 %v2415
  %v3282 = vpop.f32.mrf.mxu0
  %v3283 = vadd.f32 %v3242, %v3282
  %v3284 = vpop.f32.mrf.mxu0
  %v3285 = vadd.f32 %v3244, %v3284
  %v3286 = vpop.f32.mrf.mxu0
  %v3287 = vpop.f32.mrf.mxu0
  %3288 = vdwg.mxu0
  %3289 = vmatprep.subr.bf16.mxu0 %v2982
  %3290 = vmatpush1.bf16.msra.mxu0 %v2981
  %3291 = vmatprep.subr.bf16.mxu0 %v2978
  %3292 = vmatpush1.bf16.msra.mxu0 %v2977
  %3293 = vmatprep.subr.bf16.mxu0 %v2974
  %3294 = vmatpush1.bf16.msra.mxu0 %v2973
  %3295 = vmatprep.subr.bf16.mxu0 %v2970
  %3296 = vmatpush1.bf16.msra.mxu0 %v2969
  %3297 = vmatprep.subr.bf16.mxu0 %v2966
  %3298 = vmatpush1.bf16.msra.mxu0 %v2965
  %3299 = vmatprep.subr.bf16.mxu0 %v2962
  %3300 = vmatpush1.bf16.msra.mxu0 %v2961
  %3301 = vmatprep.subr.bf16.mxu0 %v2958
  %3302 = vmatpush1.bf16.msra.mxu0 %v2957
  %3303 = vmatprep.subr.bf16.mxu0 %v2954
  %3304 = vmatpush1.bf16.msra.mxu0 %v2953
  %3305 = vmatprep.subr.bf16.mxu0 %v3014
  %3306 = vmatpush2.bf16.msra.mxu0 %v3013
  %3307 = vmatprep.subr.bf16.mxu0 %v3010
  %3308 = vmatpush2.bf16.msra.mxu0 %v3009
  %3309 = vmatprep.subr.bf16.mxu0 %v3006
  %3310 = vmatpush2.bf16.msra.mxu0 %v3005
  %3311 = vmatprep.subr.bf16.mxu0 %v3002
  %3312 = vmatpush2.bf16.msra.mxu0 %v3001
  %3313 = vmatprep.subr.bf16.mxu0 %v2998
  %3314 = vmatpush2.bf16.msra.mxu0 %v2997
  %3315 = vmatprep.subr.bf16.mxu0 %v2994
  %3316 = vmatpush2.bf16.msra.mxu0 %v2993
  %3317 = vmatprep.subr.bf16.mxu0 %v2990
  %3318 = vmatpush2.bf16.msra.mxu0 %v2989
  %3319 = vmatprep.subr.bf16.mxu0 %v2986
  %3320 = vmatpush2.bf16.msra.mxu0 %v2985
  %3321 = vmatprep.mubr.bf16.mxu0 %v2414
  %3322 = vmatmul.mubr.bf16.gmra.mxu0 %v2413
  %v3323 = vpop.f32.mrf.mxu0
  %v3324 = vadd.f32 %v2558, %v3323
  %v3325 = vpop.f32.mrf.mxu0
  %v3326 = vadd.f32 %v2562, %v3325
  %v3327 = vpop.f32.mrf.mxu0
  %v3328 = vpop.f32.mrf.mxu0
  %3329 = vdwg.mxu0
  %3330 = vmatprep.subr.bf16.mxu0 %v3046
  %3331 = vmatpush1.bf16.msra.mxu0 %v3045
  %3332 = vmatprep.subr.bf16.mxu0 %v3042
  %3333 = vmatpush1.bf16.msra.mxu0 %v3041
  %3334 = vmatprep.subr.bf16.mxu0 %v3038
  %3335 = vmatpush1.bf16.msra.mxu0 %v3037
  %3336 = vmatprep.subr.bf16.mxu0 %v3034
  %3337 = vmatpush1.bf16.msra.mxu0 %v3033
  %3338 = vmatprep.subr.bf16.mxu0 %v3030
  %3339 = vmatpush1.bf16.msra.mxu0 %v3029
  %3340 = vmatprep.subr.bf16.mxu0 %v3026
  %3341 = vmatpush1.bf16.msra.mxu0 %v3025
  %3342 = vmatprep.subr.bf16.mxu0 %v3022
  %3343 = vmatpush1.bf16.msra.mxu0 %v3021
  %3344 = vmatprep.subr.bf16.mxu0 %v3018
  %3345 = vmatpush1.bf16.msra.mxu0 %v3017
  %3346 = vmatprep.subr.bf16.mxu0 %v3078
  %3347 = vmatpush2.bf16.msra.mxu0 %v3077
  %3348 = vmatprep.subr.bf16.mxu0 %v3074
  %3349 = vmatpush2.bf16.msra.mxu0 %v3073
  %3350 = vmatprep.subr.bf16.mxu0 %v3070
  %3351 = vmatpush2.bf16.msra.mxu0 %v3069
  %3352 = vmatprep.subr.bf16.mxu0 %v3066
  %3353 = vmatpush2.bf16.msra.mxu0 %v3065
  %3354 = vmatprep.subr.bf16.mxu0 %v3062
  %3355 = vmatpush2.bf16.msra.mxu0 %v3061
  %3356 = vmatprep.subr.bf16.mxu0 %v3058
  %3357 = vmatpush2.bf16.msra.mxu0 %v3057
  %3358 = vmatprep.subr.bf16.mxu0 %v3054
  %3359 = vmatpush2.bf16.msra.mxu0 %v3053
  %3360 = vmatprep.subr.bf16.mxu0 %v3050
  %3361 = vmatpush2.bf16.msra.mxu0 %v3049
  %3362 = vmatprep.mubr.bf16.mxu0 %v2416
  %3363 = vmatmul.mubr.bf16.gmra.mxu0 %v2415
  %v3364 = vpop.f32.mrf.mxu0
  %v3365 = vadd.f32 %v3324, %v3364
  %v3366 = vpop.f32.mrf.mxu0
  %v3367 = vadd.f32 %v3326, %v3366
  %v3368 = vpop.f32.mrf.mxu0
  %v3369 = vpop.f32.mrf.mxu0
  %3370 = vdwg.mxu0
  %v3375 = vcombine.low %v3283, %v3285
  %v3376 = vcombine.low %v3365, %v3367
  %v3378 = vunpack.c.l.s4 1983009808
  %v3379 = vunpack.c.0.s8 %v3378
  %v3380 = vlaneseq
  %v3381 = vshrl.u32 %v3380, 7
  %v3382 = vsub.s32 %v3379, %v3381
  %v3383 = vrot.slane %v3375, %v3382
  %v3385 = vunpack.c.l.s4 1983009808
  %v3386 = vunpack.c.0.s8 %v3385
  %v3387 = vlaneseq
  %v3388 = vshrl.u32 %v3387, 7
  %v3389 = vsub.s32 %v3386, %v3388
  %v3390 = vrot.slane %v3376, %v3389
  %v3391 = vcombine.low %v3383, %v3390
  %3393 = vst [vmem:[%s4] sm:$0xff] %v3391
  // Predicated region
  $region18: #{cnn3d_forward.1} parent=0 // pred_check
    _
  $region19: #{cnn3d_forward.1} parent=0 // pred_check_branch
    %3395 = sbr.rel (0) target = $region21
  $region20: #{cnn3d_forward.1} parent=0 // pred_region
    _
  $region21: #{cnn3d_forward.1} parent=0 // pred_fallthru
    _
  // Predicated region
  $region22: #{cnn3d_forward.1} parent=0 // pred_check
    _
  $region23: #{cnn3d_forward.1} parent=0 // pred_check_branch
    %3397 = sbr.rel (0) target = $region25
  $region24: #{cnn3d_forward.1} parent=0 // pred_region
    _
  $region25: #{cnn3d_forward.1} parent=0 // pred_fallthru
    _

</llo_original>
